<compile_context>
chip_gen: v7x
topology: tpu7x:2x2x1
jax: 0.10.0
libtpu: 0.0.40
codegen_flags: <defaults>
</compile_context>

<pallas_src>
import functools

import jax
import jax.numpy as jnp
from jax import lax
from jax.experimental import pallas as pl
from jax.experimental.pallas import tpu as pltpu


# ----------------------------- Pallas kernel --------------------------------

def fused_lstm_head_kernel(num_layers, H, T, B, x_ref, *refs):
    """Fused stacked-LSTM + 2-Linear head, fully VMEM-resident.

    x_ref            : (T*B, F)  time-major-flat input
    layer 0          : w_ih0 (F,4H), w_hh0 (H,4H), b0 (1,4H)
    layers l>=1      : w_stack_l (2H,4H) = vstack([w_ih_l, w_hh_l]), b_l (1,4H)
    head             : w1 (H,H) [already transposed], b1 (1,H), w2 (O,H) torch layout, b2 (1,O)
    o_ref            : (T*B, O)  time-major-flat output
    hs_buf (scratch) : (T*B, H)  top-layer hidden states

    Gate columns are pre-permuted to (i, f, o | g) and the i/f/o columns pre-scaled by 0.5 so
    a single tanh over the full 4H vreg plus one fma yields sigmoid(i), sigmoid(f), sigmoid(o),
    tanh(g).
    """
    n_lstm = 3 + 2 * (num_layers - 1)
    lstm_refs = refs[:n_lstm]
    w1_ref, b1_ref, w2_ref, b2_ref = refs[n_lstm:n_lstm + 4]
    o_ref = refs[n_lstm + 4]
    hs_buf = refs[n_lstm + 5]

    f32 = jnp.float32
    H4 = 4 * H

    # Per-column activation select, built ONCE at full (B,4H) so the per-step fma needs no
    # broadcast: cols < 3H (i,f,o) -> 0.5*tanh+0.5 == sigmoid of the un-scaled gate; g -> tanh.
    lane = lax.broadcasted_iota(jnp.int32, (B, H4), 1)
    is_g = lane >= 3 * H
    act_scale = jnp.where(is_g, f32(1.0), f32(0.5))
    act_off = jnp.where(is_g, f32(0.0), f32(0.5))

    def gate_update(gates, c):
        t_act = jnp.tanh(gates)                    # ONE EUP push over the full 4H width
        act = t_act * act_scale + act_off          # i,f,o -> sigmoid ; g -> tanh (VPU fma)
        i_g = act[:, 0:H]
        f_g = act[:, H:2 * H]
        o_g = act[:, 2 * H:3 * H]
        g_g = act[:, 3 * H:]
        c = f_g * c + i_g * g_g
        h = o_g * jnp.tanh(c)
        return h, c

    # Layer 0: input projection hoisted out of the recurrence (one matmul for all timesteps).
    x = x_ref[...].astype(f32)                                                      # (T*B, F)
    w_ih0 = lstm_refs[0][...]
    w_hh0 = lstm_refs[1][...]
    gates_x0 = jnp.dot(x, w_ih0, preferred_element_type=f32) + lstm_refs[2][...]    # (T*B, 4H)

    # Layers >= 1: per-step fused input+recurrent matmul; bias pre-broadcast once.
    w_stk = [lstm_refs[3 + 2 * i][...] for i in range(num_layers - 1)]              # (2H, 4H)
    b_stk = [jnp.broadcast_to(lstm_refs[4 + 2 * i][...], (B, H4))
             for i in range(num_layers - 1)]

    h = [jnp.zeros((B, H), f32) for _ in range(num_layers)]
    c = [jnp.zeros((B, H), f32) for _ in range(num_layers)]

    # Fully-unrolled recurrence in ONE basic block: layer l at step t depends only on layer
    # l-1 at step t, so the LLO scheduler wavefront-overlaps the layers' serial chains.
    # TODO(synk): switch to lax.fori_loop(..., unroll=k) if T grows large.
    for t in range(T):
        g0 = gates_x0[t * B:(t + 1) * B] + jnp.dot(h[0], w_hh0, preferred_element_type=f32)
        h[0], c[0] = gate_update(g0, c[0])
        for l in range(1, num_layers):
            inp = jnp.concatenate([h[l - 1], h[l]], axis=-1)                        # (B, 2H)
            g = jnp.dot(inp, w_stk[l - 1], preferred_element_type=f32) + b_stk[l - 1]
            h[l], c[l] = gate_update(g, c[l])
        hs_buf[t * B:(t + 1) * B, :] = h[num_layers - 1]    # off the h->h critical path

    # Head: Linear(H,H) then Linear(H,O), applied to every timestep, no activation
    # (matches the PyTorch module).
    seq = hs_buf[...]
    h1 = jnp.dot(seq, w1_ref[...], preferred_element_type=f32) + b1_ref[...]
    w2 = w2_ref[...]                   # (O, H) torch layout
    b2 = b2_ref[...]                   # (1, O)
    O = w2.shape[0]
    # O is tiny (1 or 2): VPU multiply + lane reduction instead of an MXU push/pop.
    cols = [jnp.sum(h1 * w2[oc:oc + 1, :], axis=-1, keepdims=True) for oc in range(O)]
    y = cols[0] if O == 1 else jnp.concatenate(cols, axis=-1)                       # (T*B, O)
    # NOTE: last-dim-1 output -> masked store; tiny at T*B=16, accepted knowingly.
    o_ref[...] = (y + b2).astype(o_ref.dtype)


# ------------------------------ JAX wrappers ---------------------------------

_VMEM_SPEC = pl.BlockSpec(memory_space=pltpu.MemorySpace.VMEM)


def prepare_params(params):
    """One-time parameter prep (run OUTSIDE the jitted serving path).

    - permutes gate columns from PyTorch (i,f,g,o) to kernel (i,f,o,g)
    - pre-scales the i/f/o columns by 0.5 (folds the x/2 of sigmoid(x)=0.5*tanh(x/2)+0.5
      into the weights, so the kernel needs a single tanh per gate vector)
    - stacks w_ih / w_hh for layers >= 1 for the per-step fused matmul
    Returns a flat tuple of arrays in the kernel's argument order (after x).
    """
    def prep_gate_cols(w):
        i, f, g, o = jnp.split(w, 4, axis=-1)
        return jnp.concatenate([0.5 * i, 0.5 * f, 0.5 * o, g], axis=-1)

    weights = []
    for l, (w_ih_t, w_hh_t, b) in enumerate(params["lstm"]):
        w_ih_p = prep_gate_cols(w_ih_t)
        w_hh_p = prep_gate_cols(w_hh_t)
        b_p = prep_gate_cols(b)
        if l == 0:
            weights += [w_ih_p, w_hh_p, b_p]
        else:
            weights += [jnp.concatenate([w_ih_p, w_hh_p], axis=0), b_p]   # (2H,4H), (1,4H)
    weights += [params["w1_t"], params["b1"], params["w2"], params["b2"]]
    return tuple(jax.device_put(w) for w in weights)


@jax.jit
def regression_lstm_forward(x, weights):
    """Forward pass of RegressionLSTM (inference); one fused pallas_call.

    x       : (B, T, F) batch-first, as in the PyTorch module
    weights : output of prepare_params()
    returns : (B, T, O)
    """
    B, T, F = x.shape
    num_layers = (len(weights) - 5) // 2
    H = weights[1].shape[0]            # w_hh0 is (H, 4H)
    O = weights[-1].shape[1]           # b2 is (1, O)

    x_flat = jnp.transpose(x, (1, 0, 2)).reshape(T * B, F)     # time-major flat

    kernel = functools.partial(fused_lstm_head_kernel, num_layers, H, T, B)
    y_flat = pl.pallas_call(
        kernel,
        out_shape=jax.ShapeDtypeStruct((T * B, O), jnp.float32),
        in_specs=[_VMEM_SPEC] * (1 + len(weights)),
        out_specs=_VMEM_SPEC,
        scratch_shapes=[pltpu.VMEM((T * B, H), jnp.float32)],
    )(x_flat, *weights)
    return jnp.transpose(y_flat.reshape(T, B, O), (1, 0, 2))   # (B, T, O)


# ------------------------ deterministic param init ---------------------------

def init_params(key, num_features, hidden_size, num_layers, output_size):
    """Params in the original PyTorch layout/gate-order (i,f,g,o); prep happens separately."""
    params = {"lstm": []}
    keys = jax.random.split(key, 4 * num_layers + 4)
    ki = 0
    scale = 1.0 / jnp.sqrt(hidden_size)
    for l in range(num_layers):
        in_sz = num_features if l == 0 else hidden_size
        w_ih = jax.random.uniform(keys[ki], (4 * hidden_size, in_sz), jnp.float32, -scale, scale); ki += 1
        w_hh = jax.random.uniform(keys[ki], (4 * hidden_size, hidden_size), jnp.float32, -scale, scale); ki += 1
        b_ih = jax.random.uniform(keys[ki], (4 * hidden_size,), jnp.float32, -scale, scale); ki += 1
        b_hh = jax.random.uniform(keys[ki], (4 * hidden_size,), jnp.float32, -scale, scale); ki += 1
        params["lstm"].append((w_ih.T, w_hh.T, (b_ih + b_hh).reshape(1, -1)))
    w1 = jax.random.uniform(keys[ki], (hidden_size, hidden_size), jnp.float32, -scale, scale); ki += 1
    b1 = jax.random.uniform(keys[ki], (hidden_size,), jnp.float32, -scale, scale); ki += 1
    w2 = jax.random.uniform(keys[ki], (output_size, hidden_size), jnp.float32, -scale, scale); ki += 1
    b2 = jax.random.uniform(keys[ki], (output_size,), jnp.float32, -scale, scale); ki += 1
    params["w1_t"] = w1.T
    params["b1"] = b1.reshape(1, -1)
    params["w2"] = w2                  # keep (O, H) torch layout for the VPU-reduce head
    params["b2"] = b2.reshape(1, -1)
    return params


# ----------------------------- pure-JAX reference ----------------------------

def reference_forward(x, params):
    out = x
    for (w_ih_t, w_hh_t, b) in params["lstm"]:
        B, T, _ = out.shape
        H = w_hh_t.shape[0]

        def step(carry, x_t, w_ih_t=w_ih_t, w_hh_t=w_hh_t, b=b, H=H):
            h, c = carry
            gates = x_t @ w_ih_t + h @ w_hh_t + b
            i_g = jax.nn.sigmoid(gates[:, 0 * H:1 * H])
            f_g = jax.nn.sigmoid(gates[:, 1 * H:2 * H])
            g_g = jnp.tanh(gates[:, 2 * H:3 * H])
            o_g = jax.nn.sigmoid(gates[:, 3 * H:4 * H])
            c = f_g * c + i_g * g_g
            h = o_g * jnp.tanh(c)
            return (h, c), h

        init = (jnp.zeros((B, H)), jnp.zeros((B, H)))
        _, hs = lax.scan(step, init, jnp.swapaxes(out, 0, 1))
        out = jnp.swapaxes(hs, 0, 1)
    h1 = out @ params["w1_t"] + params["b1"]
    return h1 @ params["w2"].T + params["b2"]


# --------------------------------- main ---------------------------------------

if __name__ == "__main__":
    batch = 2
    seq_len = 8
    num_features = 4
    hidden_size = 32
    num_layers = 2
    output_size = 1        # data_mode != DataMode.BOTH

    key = jax.random.PRNGKey(0)
    kx, kp = jax.random.split(key)
    x = jax.random.normal(kx, (batch, seq_len, num_features), jnp.float32)
    params = init_params(kp, num_features, hidden_size, num_layers, output_size)

    weights = prepare_params(params)   # one-time prep, outside the serving path
    y = regression_lstm_forward(x, weights)
    y = jax.block_until_ready(y)

    y_ref = reference_forward(x, params)
    assert y.shape == (batch, seq_len, output_size), y.shape
    assert jnp.allclose(y, y_ref, atol=1e-5, rtol=1e-5), "mismatch vs reference"

    print("KERNEL_OK")
</pallas_src>

<mosaic_0001>
module attributes {stable_mosaic.version = 11 : i64} {
  func.func @fused_lstm_head_kernel(%arg0: memref<16x4xf32, #tpu.memory_space<vmem>>, %arg1: memref<4x128xf32, #tpu.memory_space<vmem>>, %arg2: memref<32x128xf32, #tpu.memory_space<vmem>>, %arg3: memref<1x128xf32, #tpu.memory_space<vmem>>, %arg4: memref<64x128xf32, #tpu.memory_space<vmem>>, %arg5: memref<1x128xf32, #tpu.memory_space<vmem>>, %arg6: memref<32x32xf32, #tpu.memory_space<vmem>>, %arg7: memref<1x32xf32, #tpu.memory_space<vmem>>, %arg8: memref<1x32xf32, #tpu.memory_space<vmem>>, %arg9: memref<1x1xf32, #tpu.memory_space<vmem>>, %arg10: memref<16x1xf32, #tpu.memory_space<vmem>>, %arg11: memref<16x32xf32, #tpu.memory_space<vmem>>) attributes {dimension_semantics = [], scalar_prefetch = 0 : i64, scratch_operands = 1 : i64, tpu.core_type = #tpu.core_type<tc>} {
    %0 = tpu.iota {dimensions = array<i32: 1>} : vector<2x128xi32>
    %c96_i32 = arith.constant 96 : i32
    %1 = vector.broadcast %c96_i32 : i32 to vector<2x128xi32>
    %2 = arith.cmpi sge, %0, %1 : vector<2x128xi32>
    %cst = arith.constant 1.000000e+00 : f32
    %cst_0 = arith.constant 5.000000e-01 : f32
    %3 = vector.broadcast %cst : f32 to vector<2x128xf32>
    %4 = vector.broadcast %cst_0 : f32 to vector<2x128xf32>
    %5 = arith.select %2, %3, %4 : vector<2x128xi1>, vector<2x128xf32>
    %cst_1 = arith.constant 0.000000e+00 : f32
    %cst_2 = arith.constant 5.000000e-01 : f32
    %6 = vector.broadcast %cst_1 : f32 to vector<2x128xf32>
    %7 = vector.broadcast %cst_2 : f32 to vector<2x128xf32>
    %8 = arith.select %2, %6, %7 : vector<2x128xi1>, vector<2x128xf32>
    %c0 = arith.constant 0 : index
    %c0_3 = arith.constant 0 : index
    %9 = vector.load %arg0[%c0, %c0_3] : memref<16x4xf32, #tpu.memory_space<vmem>>, vector<16x4xf32>
    %c0_4 = arith.constant 0 : index
    %c0_5 = arith.constant 0 : index
    %10 = vector.load %arg1[%c0_4, %c0_5] : memref<4x128xf32, #tpu.memory_space<vmem>>, vector<4x128xf32>
    %c0_6 = arith.constant 0 : index
    %c0_7 = arith.constant 0 : index
    %11 = vector.load %arg2[%c0_6, %c0_7] : memref<32x128xf32, #tpu.memory_space<vmem>>, vector<32x128xf32>
    %cst_8 = arith.constant dense<0.000000e+00> : vector<16x128xf32>
    %12 = tpu.matmul %9, %10, %cst_8 {dimension_numbers = #tpu.dot_dimension_numbers<[1], [0], [0], [1], [0, 0, 1, 1], [], []>} : vector<16x4xf32>, vector<4x128xf32>, vector<16x128xf32> -> vector<16x128xf32>
    %c0_9 = arith.constant 0 : index
    %c0_10 = arith.constant 0 : index
    %13 = vector.load %arg3[%c0_9, %c0_10] : memref<1x128xf32, #tpu.memory_space<vmem>>, vector<1x128xf32>
    %14 = vector.broadcast %13 : vector<1x128xf32> to vector<16x128xf32>
    %15 = arith.addf %12, %14 : vector<16x128xf32>
    %c0_11 = arith.constant 0 : index
    %c0_12 = arith.constant 0 : index
    %16 = vector.load %arg4[%c0_11, %c0_12] : memref<64x128xf32, #tpu.memory_space<vmem>>, vector<64x128xf32>
    %c0_13 = arith.constant 0 : index
    %c0_14 = arith.constant 0 : index
    %17 = vector.load %arg5[%c0_13, %c0_14] : memref<1x128xf32, #tpu.memory_space<vmem>>, vector<1x128xf32>
    %18 = vector.shape_cast %17 : vector<1x128xf32> to vector<1x128xf32>
    %19 = vector.broadcast %18 : vector<1x128xf32> to vector<2x128xf32>
    %cst_15 = arith.constant 0.000000e+00 : f32
    %20 = vector.broadcast %cst_15 : f32 to vector<2x32xf32>
    %cst_16 = arith.constant 0.000000e+00 : f32
    %21 = vector.broadcast %cst_16 : f32 to vector<2x32xf32>
    %cst_17 = arith.constant 0.000000e+00 : f32
    %22 = vector.broadcast %cst_17 : f32 to vector<2x32xf32>
    %cst_18 = arith.constant 0.000000e+00 : f32
    %23 = vector.broadcast %cst_18 : f32 to vector<2x32xf32>
    %24 = vector.extract_strided_slice %15 {offsets = [0, 0], sizes = [2, 128], strides = [1, 1]} : vector<16x128xf32> to vector<2x128xf32>
    %cst_19 = arith.constant dense<0.000000e+00> : vector<2x128xf32>
    %25 = tpu.matmul %20, %11, %cst_19 {dimension_numbers = #tpu.dot_dimension_numbers<[1], [0], [0], [1], [0, 0, 1, 1], [], []>} : vector<2x32xf32>, vector<32x128xf32>, vector<2x128xf32> -> vector<2x128xf32>
    %26 = arith.addf %24, %25 : vector<2x128xf32>
    %27 = math.tanh %26 : vector<2x128xf32>
    %28 = arith.mulf %27, %5 : vector<2x128xf32>
    %29 = arith.addf %28, %8 : vector<2x128xf32>
    %30 = vector.extract_strided_slice %29 {offsets = [0, 0], sizes = [2, 32], strides = [1, 1]} : vector<2x128xf32> to vector<2x32xf32>
    %31 = vector.extract_strided_slice %29 {offsets = [0, 32], sizes = [2, 32], strides = [1, 1]} : vector<2x128xf32> to vector<2x32xf32>
    %32 = vector.extract_strided_slice %29 {offsets = [0, 64], sizes = [2, 32], strides = [1, 1]} : vector<2x128xf32> to vector<2x32xf32>
    %33 = vector.extract_strided_slice %29 {offsets = [0, 96], sizes = [2, 32], strides = [1, 1]} : vector<2x128xf32> to vector<2x32xf32>
    %34 = arith.mulf %31, %22 : vector<2x32xf32>
    %35 = arith.mulf %30, %33 : vector<2x32xf32>
    %36 = arith.addf %34, %35 : vector<2x32xf32>
    %37 = math.tanh %36 : vector<2x32xf32>
    %38 = arith.mulf %32, %37 : vector<2x32xf32>
    %39 = tpu.concatenate %38, %21 in 1 : vector<2x32xf32>, vector<2x32xf32> -> vector<2x64xf32>
    %cst_20 = arith.constant dense<0.000000e+00> : vector<2x128xf32>
    %40 = tpu.matmul %39, %16, %cst_20 {dimension_numbers = #tpu.dot_dimension_numbers<[1], [0], [0], [1], [0, 0, 1, 1], [], []>} : vector<2x64xf32>, vector<64x128xf32>, vector<2x128xf32> -> vector<2x128xf32>
    %41 = arith.addf %40, %19 : vector<2x128xf32>
    %42 = math.tanh %41 : vector<2x128xf32>
    %43 = arith.mulf %42, %5 : vector<2x128xf32>
    %44 = arith.addf %43, %8 : vector<2x128xf32>
    %45 = vector.extract_strided_slice %44 {offsets = [0, 0], sizes = [2, 32], strides = [1, 1]} : vector<2x128xf32> to vector<2x32xf32>
    %46 = vector.extract_strided_slice %44 {offsets = [0, 32], sizes = [2, 32], strides = [1, 1]} : vector<2x128xf32> to vector<2x32xf32>
    %47 = vector.extract_strided_slice %44 {offsets = [0, 64], sizes = [2, 32], strides = [1, 1]} : vector<2x128xf32> to vector<2x32xf32>
    %48 = vector.extract_strided_slice %44 {offsets = [0, 96], sizes = [2, 32], strides = [1, 1]} : vector<2x128xf32> to vector<2x32xf32>
    %49 = arith.mulf %46, %23 : vector<2x32xf32>
    %50 = arith.mulf %45, %48 : vector<2x32xf32>
    %51 = arith.addf %49, %50 : vector<2x32xf32>
    %52 = math.tanh %51 : vector<2x32xf32>
    %53 = arith.mulf %47, %52 : vector<2x32xf32>
    %c0_21 = arith.constant 0 : index
    %c0_22 = arith.constant 0 : index
    %54 = vector.load %arg11[%c0_21, %c0_22] : memref<16x32xf32, #tpu.memory_space<vmem>>, vector<2x32xf32>
    tpu.vector_store %arg11[%c0_21, %c0_22], %53 {strides = array<i32>} : memref<16x32xf32, #tpu.memory_space<vmem>>, vector<2x32xf32>,
    %55 = vector.extract_strided_slice %15 {offsets = [2, 0], sizes = [2, 128], strides = [1, 1]} : vector<16x128xf32> to vector<2x128xf32>
    %cst_23 = arith.constant dense<0.000000e+00> : vector<2x128xf32>
    %56 = tpu.matmul %38, %11, %cst_23 {dimension_numbers = #tpu.dot_dimension_numbers<[1], [0], [0], [1], [0, 0, 1, 1], [], []>} : vector<2x32xf32>, vector<32x128xf32>, vector<2x128xf32> -> vector<2x128xf32>
    %57 = arith.addf %55, %56 : vector<2x128xf32>
    %58 = math.tanh %57 : vector<2x128xf32>
    %59 = arith.mulf %58, %5 : vector<2x128xf32>
    %60 = arith.addf %59, %8 : vector<2x128xf32>
    %61 = vector.extract_strided_slice %60 {offsets = [0, 0], sizes = [2, 32], strides = [1, 1]} : vector<2x128xf32> to vector<2x32xf32>
    %62 = vector.extract_strided_slice %60 {offsets = [0, 32], sizes = [2, 32], strides = [1, 1]} : vector<2x128xf32> to vector<2x32xf32>
    %63 = vector.extract_strided_slice %60 {offsets = [0, 64], sizes = [2, 32], strides = [1, 1]} : vector<2x128xf32> to vector<2x32xf32>
    %64 = vector.extract_strided_slice %60 {offsets = [0, 96], sizes = [2, 32], strides = [1, 1]} : vector<2x128xf32> to vector<2x32xf32>
    %65 = arith.mulf %62, %36 : vector<2x32xf32>
    %66 = arith.mulf %61, %64 : vector<2x32xf32>
    %67 = arith.addf %65, %66 : vector<2x32xf32>
    %68 = math.tanh %67 : vector<2x32xf32>
    %69 = arith.mulf %63, %68 : vector<2x32xf32>
    %70 = tpu.concatenate %69, %53 in 1 : vector<2x32xf32>, vector<2x32xf32> -> vector<2x64xf32>
    %cst_24 = arith.constant dense<0.000000e+00> : vector<2x128xf32>
    %71 = tpu.matmul %70, %16, %cst_24 {dimension_numbers = #tpu.dot_dimension_numbers<[1], [0], [0], [1], [0, 0, 1, 1], [], []>} : vector<2x64xf32>, vector<64x128xf32>, vector<2x128xf32> -> vector<2x128xf32>
    %72 = arith.addf %71, %19 : vector<2x128xf32>
    %73 = math.tanh %72 : vector<2x128xf32>
    %74 = arith.mulf %73, %5 : vector<2x128xf32>
    %75 = arith.addf %74, %8 : vector<2x128xf32>
    %76 = vector.extract_strided_slice %75 {offsets = [0, 0], sizes = [2, 32], strides = [1, 1]} : vector<2x128xf32> to vector<2x32xf32>
    %77 = vector.extract_strided_slice %75 {offsets = [0, 32], sizes = [2, 32], strides = [1, 1]} : vector<2x128xf32> to vector<2x32xf32>
    %78 = vector.extract_strided_slice %75 {offsets = [0, 64], sizes = [2, 32], strides = [1, 1]} : vector<2x128xf32> to vector<2x32xf32>
    %79 = vector.extract_strided_slice %75 {offsets = [0, 96], sizes = [2, 32], strides = [1, 1]} : vector<2x128xf32> to vector<2x32xf32>
    %80 = arith.mulf %77, %51 : vector<2x32xf32>
    %81 = arith.mulf %76, %79 : vector<2x32xf32>
    %82 = arith.addf %80, %81 : vector<2x32xf32>
    %83 = math.tanh %82 : vector<2x32xf32>
    %84 = arith.mulf %78, %83 : vector<2x32xf32>
    %c2 = arith.constant 2 : index
    %c0_25 = arith.constant 0 : index
    %85 = vector.load %arg11[%c2, %c0_25] : memref<16x32xf32, #tpu.memory_space<vmem>>, vector<2x32xf32>
    tpu.vector_store %arg11[%c2, %c0_25], %84 {strides = array<i32>} : memref<16x32xf32, #tpu.memory_space<vmem>>, vector<2x32xf32>,
    %86 = vector.extract_strided_slice %15 {offsets = [4, 0], sizes = [2, 128], strides = [1, 1]} : vector<16x128xf32> to vector<2x128xf32>
    %cst_26 = arith.constant dense<0.000000e+00> : vector<2x128xf32>
    %87 = tpu.matmul %69, %11, %cst_26 {dimension_numbers = #tpu.dot_dimension_numbers<[1], [0], [0], [1], [0, 0, 1, 1], [], []>} : vector<2x32xf32>, vector<32x128xf32>, vector<2x128xf32> -> vector<2x128xf32>
    %88 = arith.addf %86, %87 : vector<2x128xf32>
    %89 = math.tanh %88 : vector<2x128xf32>
    %90 = arith.mulf %89, %5 : vector<2x128xf32>
    %91 = arith.addf %90, %8 : vector<2x128xf32>
    %92 = vector.extract_strided_slice %91 {offsets = [0, 0], sizes = [2, 32], strides = [1, 1]} : vector<2x128xf32> to vector<2x32xf32>
    %93 = vector.extract_strided_slice %91 {offsets = [0, 32], sizes = [2, 32], strides = [1, 1]} : vector<2x128xf32> to vector<2x32xf32>
    %94 = vector.extract_strided_slice %91 {offsets = [0, 64], sizes = [2, 32], strides = [1, 1]} : vector<2x128xf32> to vector<2x32xf32>
    %95 = vector.extract_strided_slice %91 {offsets = [0, 96], sizes = [2, 32], strides = [1, 1]} : vector<2x128xf32> to vector<2x32xf32>
    %96 = arith.mulf %93, %67 : vector<2x32xf32>
    %97 = arith.mulf %92, %95 : vector<2x32xf32>
    %98 = arith.addf %96, %97 : vector<2x32xf32>
    %99 = math.tanh %98 : vector<2x32xf32>
    %100 = arith.mulf %94, %99 : vector<2x32xf32>
    %101 = tpu.concatenate %100, %84 in 1 : vector<2x32xf32>, vector<2x32xf32> -> vector<2x64xf32>
    %cst_27 = arith.constant dense<0.000000e+00> : vector<2x128xf32>
    %102 = tpu.matmul %101, %16, %cst_27 {dimension_numbers = #tpu.dot_dimension_numbers<[1], [0], [0], [1], [0, 0, 1, 1], [], []>} : vector<2x64xf32>, vector<64x128xf32>, vector<2x128xf32> -> vector<2x128xf32>
    %103 = arith.addf %102, %19 : vector<2x128xf32>
    %104 = math.tanh %103 : vector<2x128xf32>
    %105 = arith.mulf %104, %5 : vector<2x128xf32>
    %106 = arith.addf %105, %8 : vector<2x128xf32>
    %107 = vector.extract_strided_slice %106 {offsets = [0, 0], sizes = [2, 32], strides = [1, 1]} : vector<2x128xf32> to vector<2x32xf32>
    %108 = vector.extract_strided_slice %106 {offsets = [0, 32], sizes = [2, 32], strides = [1, 1]} : vector<2x128xf32> to vector<2x32xf32>
    %109 = vector.extract_strided_slice %106 {offsets = [0, 64], sizes = [2, 32], strides = [1, 1]} : vector<2x128xf32> to vector<2x32xf32>
    %110 = vector.extract_strided_slice %106 {offsets = [0, 96], sizes = [2, 32], strides = [1, 1]} : vector<2x128xf32> to vector<2x32xf32>
    %111 = arith.mulf %108, %82 : vector<2x32xf32>
    %112 = arith.mulf %107, %110 : vector<2x32xf32>
    %113 = arith.addf %111, %112 : vector<2x32xf32>
    %114 = math.tanh %113 : vector<2x32xf32>
    %115 = arith.mulf %109, %114 : vector<2x32xf32>
    %c4 = arith.constant 4 : index
    %c0_28 = arith.constant 0 : index
    %116 = vector.load %arg11[%c4, %c0_28] : memref<16x32xf32, #tpu.memory_space<vmem>>, vector<2x32xf32>
    tpu.vector_store %arg11[%c4, %c0_28], %115 {strides = array<i32>} : memref<16x32xf32, #tpu.memory_space<vmem>>, vector<2x32xf32>,
    %117 = vector.extract_strided_slice %15 {offsets = [6, 0], sizes = [2, 128], strides = [1, 1]} : vector<16x128xf32> to vector<2x128xf32>
    %cst_29 = arith.constant dense<0.000000e+00> : vector<2x128xf32>
    %118 = tpu.matmul %100, %11, %cst_29 {dimension_numbers = #tpu.dot_dimension_numbers<[1], [0], [0], [1], [0, 0, 1, 1], [], []>} : vector<2x32xf32>, vector<32x128xf32>, vector<2x128xf32> -> vector<2x128xf32>
    %119 = arith.addf %117, %118 : vector<2x128xf32>
    %120 = math.tanh %119 : vector<2x128xf32>
    %121 = arith.mulf %120, %5 : vector<2x128xf32>
    %122 = arith.addf %121, %8 : vector<2x128xf32>
    %123 = vector.extract_strided_slice %122 {offsets = [0, 0], sizes = [2, 32], strides = [1, 1]} : vector<2x128xf32> to vector<2x32xf32>
    %124 = vector.extract_strided_slice %122 {offsets = [0, 32], sizes = [2, 32], strides = [1, 1]} : vector<2x128xf32> to vector<2x32xf32>
    %125 = vector.extract_strided_slice %122 {offsets = [0, 64], sizes = [2, 32], strides = [1, 1]} : vector<2x128xf32> to vector<2x32xf32>
    %126 = vector.extract_strided_slice %122 {offsets = [0, 96], sizes = [2, 32], strides = [1, 1]} : vector<2x128xf32> to vector<2x32xf32>
    %127 = arith.mulf %124, %98 : vector<2x32xf32>
    %128 = arith.mulf %123, %126 : vector<2x32xf32>
    %129 = arith.addf %127, %128 : vector<2x32xf32>
    %130 = math.tanh %129 : vector<2x32xf32>
    %131 = arith.mulf %125, %130 : vector<2x32xf32>
    %132 = tpu.concatenate %131, %115 in 1 : vector<2x32xf32>, vector<2x32xf32> -> vector<2x64xf32>
    %cst_30 = arith.constant dense<0.000000e+00> : vector<2x128xf32>
    %133 = tpu.matmul %132, %16, %cst_30 {dimension_numbers = #tpu.dot_dimension_numbers<[1], [0], [0], [1], [0, 0, 1, 1], [], []>} : vector<2x64xf32>, vector<64x128xf32>, vector<2x128xf32> -> vector<2x128xf32>
    %134 = arith.addf %133, %19 : vector<2x128xf32>
    %135 = math.tanh %134 : vector<2x128xf32>
    %136 = arith.mulf %135, %5 : vector<2x128xf32>
    %137 = arith.addf %136, %8 : vector<2x128xf32>
    %138 = vector.extract_strided_slice %137 {offsets = [0, 0], sizes = [2, 32], strides = [1, 1]} : vector<2x128xf32> to vector<2x32xf32>
    %139 = vector.extract_strided_slice %137 {offsets = [0, 32], sizes = [2, 32], strides = [1, 1]} : vector<2x128xf32> to vector<2x32xf32>
    %140 = vector.extract_strided_slice %137 {offsets = [0, 64], sizes = [2, 32], strides = [1, 1]} : vector<2x128xf32> to vector<2x32xf32>
    %141 = vector.extract_strided_slice %137 {offsets = [0, 96], sizes = [2, 32], strides = [1, 1]} : vector<2x128xf32> to vector<2x32xf32>
    %142 = arith.mulf %139, %113 : vector<2x32xf32>
    %143 = arith.mulf %138, %141 : vector<2x32xf32>
    %144 = arith.addf %142, %143 : vector<2x32xf32>
    %145 = math.tanh %144 : vector<2x32xf32>
    %146 = arith.mulf %140, %145 : vector<2x32xf32>
    %c6 = arith.constant 6 : index
    %c0_31 = arith.constant 0 : index
    %147 = vector.load %arg11[%c6, %c0_31] : memref<16x32xf32, #tpu.memory_space<vmem>>, vector<2x32xf32>
    tpu.vector_store %arg11[%c6, %c0_31], %146 {strides = array<i32>} : memref<16x32xf32, #tpu.memory_space<vmem>>, vector<2x32xf32>,
    %148 = vector.extract_strided_slice %15 {offsets = [8, 0], sizes = [2, 128], strides = [1, 1]} : vector<16x128xf32> to vector<2x128xf32>
    %cst_32 = arith.constant dense<0.000000e+00> : vector<2x128xf32>
    %149 = tpu.matmul %131, %11, %cst_32 {dimension_numbers = #tpu.dot_dimension_numbers<[1], [0], [0], [1], [0, 0, 1, 1], [], []>} : vector<2x32xf32>, vector<32x128xf32>, vector<2x128xf32> -> vector<2x128xf32>
    %150 = arith.addf %148, %149 : vector<2x128xf32>
    %151 = math.tanh %150 : vector<2x128xf32>
    %152 = arith.mulf %151, %5 : vector<2x128xf32>
    %153 = arith.addf %152, %8 : vector<2x128xf32>
    %154 = vector.extract_strided_slice %153 {offsets = [0, 0], sizes = [2, 32], strides = [1, 1]} : vector<2x128xf32> to vector<2x32xf32>
    %155 = vector.extract_strided_slice %153 {offsets = [0, 32], sizes = [2, 32], strides = [1, 1]} : vector<2x128xf32> to vector<2x32xf32>
    %156 = vector.extract_strided_slice %153 {offsets = [0, 64], sizes = [2, 32], strides = [1, 1]} : vector<2x128xf32> to vector<2x32xf32>
    %157 = vector.extract_strided_slice %153 {offsets = [0, 96], sizes = [2, 32], strides = [1, 1]} : vector<2x128xf32> to vector<2x32xf32>
    %158 = arith.mulf %155, %129 : vector<2x32xf32>
    %159 = arith.mulf %154, %157 : vector<2x32xf32>
    %160 = arith.addf %158, %159 : vector<2x32xf32>
    %161 = math.tanh %160 : vector<2x32xf32>
    %162 = arith.mulf %156, %161 : vector<2x32xf32>
    %163 = tpu.concatenate %162, %146 in 1 : vector<2x32xf32>, vector<2x32xf32> -> vector<2x64xf32>
    %cst_33 = arith.constant dense<0.000000e+00> : vector<2x128xf32>
    %164 = tpu.matmul %163, %16, %cst_33 {dimension_numbers = #tpu.dot_dimension_numbers<[1], [0], [0], [1], [0, 0, 1, 1], [], []>} : vector<2x64xf32>, vector<64x128xf32>, vector<2x128xf32> -> vector<2x128xf32>
    %165 = arith.addf %164, %19 : vector<2x128xf32>
    %166 = math.tanh %165 : vector<2x128xf32>
    %167 = arith.mulf %166, %5 : vector<2x128xf32>
    %168 = arith.addf %167, %8 : vector<2x128xf32>
    %169 = vector.extract_strided_slice %168 {offsets = [0, 0], sizes = [2, 32], strides = [1, 1]} : vector<2x128xf32> to vector<2x32xf32>
    %170 = vector.extract_strided_slice %168 {offsets = [0, 32], sizes = [2, 32], strides = [1, 1]} : vector<2x128xf32> to vector<2x32xf32>
    %171 = vector.extract_strided_slice %168 {offsets = [0, 64], sizes = [2, 32], strides = [1, 1]} : vector<2x128xf32> to vector<2x32xf32>
    %172 = vector.extract_strided_slice %168 {offsets = [0, 96], sizes = [2, 32], strides = [1, 1]} : vector<2x128xf32> to vector<2x32xf32>
    %173 = arith.mulf %170, %144 : vector<2x32xf32>
    %174 = arith.mulf %169, %172 : vector<2x32xf32>
    %175 = arith.addf %173, %174 : vector<2x32xf32>
    %176 = math.tanh %175 : vector<2x32xf32>
    %177 = arith.mulf %171, %176 : vector<2x32xf32>
    %c8 = arith.constant 8 : index
    %c0_34 = arith.constant 0 : index
    %178 = vector.load %arg11[%c8, %c0_34] : memref<16x32xf32, #tpu.memory_space<vmem>>, vector<2x32xf32>
    tpu.vector_store %arg11[%c8, %c0_34], %177 {strides = array<i32>} : memref<16x32xf32, #tpu.memory_space<vmem>>, vector<2x32xf32>,
    %179 = vector.extract_strided_slice %15 {offsets = [10, 0], sizes = [2, 128], strides = [1, 1]} : vector<16x128xf32> to vector<2x128xf32>
    %cst_35 = arith.constant dense<0.000000e+00> : vector<2x128xf32>
    %180 = tpu.matmul %162, %11, %cst_35 {dimension_numbers = #tpu.dot_dimension_numbers<[1], [0], [0], [1], [0, 0, 1, 1], [], []>} : vector<2x32xf32>, vector<32x128xf32>, vector<2x128xf32> -> vector<2x128xf32>
    %181 = arith.addf %179, %180 : vector<2x128xf32>
    %182 = math.tanh %181 : vector<2x128xf32>
    %183 = arith.mulf %182, %5 : vector<2x128xf32>
    %184 = arith.addf %183, %8 : vector<2x128xf32>
    %185 = vector.extract_strided_slice %184 {offsets = [0, 0], sizes = [2, 32], strides = [1, 1]} : vector<2x128xf32> to vector<2x32xf32>
    %186 = vector.extract_strided_slice %184 {offsets = [0, 32], sizes = [2, 32], strides = [1, 1]} : vector<2x128xf32> to vector<2x32xf32>
    %187 = vector.extract_strided_slice %184 {offsets = [0, 64], sizes = [2, 32], strides = [1, 1]} : vector<2x128xf32> to vector<2x32xf32>
    %188 = vector.extract_strided_slice %184 {offsets = [0, 96], sizes = [2, 32], strides = [1, 1]} : vector<2x128xf32> to vector<2x32xf32>
    %189 = arith.mulf %186, %160 : vector<2x32xf32>
    %190 = arith.mulf %185, %188 : vector<2x32xf32>
    %191 = arith.addf %189, %190 : vector<2x32xf32>
    %192 = math.tanh %191 : vector<2x32xf32>
    %193 = arith.mulf %187, %192 : vector<2x32xf32>
    %194 = tpu.concatenate %193, %177 in 1 : vector<2x32xf32>, vector<2x32xf32> -> vector<2x64xf32>
    %cst_36 = arith.constant dense<0.000000e+00> : vector<2x128xf32>
    %195 = tpu.matmul %194, %16, %cst_36 {dimension_numbers = #tpu.dot_dimension_numbers<[1], [0], [0], [1], [0, 0, 1, 1], [], []>} : vector<2x64xf32>, vector<64x128xf32>, vector<2x128xf32> -> vector<2x128xf32>
    %196 = arith.addf %195, %19 : vector<2x128xf32>
    %197 = math.tanh %196 : vector<2x128xf32>
    %198 = arith.mulf %197, %5 : vector<2x128xf32>
    %199 = arith.addf %198, %8 : vector<2x128xf32>
    %200 = vector.extract_strided_slice %199 {offsets = [0, 0], sizes = [2, 32], strides = [1, 1]} : vector<2x128xf32> to vector<2x32xf32>
    %201 = vector.extract_strided_slice %199 {offsets = [0, 32], sizes = [2, 32], strides = [1, 1]} : vector<2x128xf32> to vector<2x32xf32>
    %202 = vector.extract_strided_slice %199 {offsets = [0, 64], sizes = [2, 32], strides = [1, 1]} : vector<2x128xf32> to vector<2x32xf32>
    %203 = vector.extract_strided_slice %199 {offsets = [0, 96], sizes = [2, 32], strides = [1, 1]} : vector<2x128xf32> to vector<2x32xf32>
    %204 = arith.mulf %201, %175 : vector<2x32xf32>
    %205 = arith.mulf %200, %203 : vector<2x32xf32>
    %206 = arith.addf %204, %205 : vector<2x32xf32>
    %207 = math.tanh %206 : vector<2x32xf32>
    %208 = arith.mulf %202, %207 : vector<2x32xf32>
    %c10 = arith.constant 10 : index
    %c0_37 = arith.constant 0 : index
    %209 = vector.load %arg11[%c10, %c0_37] : memref<16x32xf32, #tpu.memory_space<vmem>>, vector<2x32xf32>
    tpu.vector_store %arg11[%c10, %c0_37], %208 {strides = array<i32>} : memref<16x32xf32, #tpu.memory_space<vmem>>, vector<2x32xf32>,
    %210 = vector.extract_strided_slice %15 {offsets = [12, 0], sizes = [2, 128], strides = [1, 1]} : vector<16x128xf32> to vector<2x128xf32>
    %cst_38 = arith.constant dense<0.000000e+00> : vector<2x128xf32>
    %211 = tpu.matmul %193, %11, %cst_38 {dimension_numbers = #tpu.dot_dimension_numbers<[1], [0], [0], [1], [0, 0, 1, 1], [], []>} : vector<2x32xf32>, vector<32x128xf32>, vector<2x128xf32> -> vector<2x128xf32>
    %212 = arith.addf %210, %211 : vector<2x128xf32>
    %213 = math.tanh %212 : vector<2x128xf32>
    %214 = arith.mulf %213, %5 : vector<2x128xf32>
    %215 = arith.addf %214, %8 : vector<2x128xf32>
    %216 = vector.extract_strided_slice %215 {offsets = [0, 0], sizes = [2, 32], strides = [1, 1]} : vector<2x128xf32> to vector<2x32xf32>
    %217 = vector.extract_strided_slice %215 {offsets = [0, 32], sizes = [2, 32], strides = [1, 1]} : vector<2x128xf32> to vector<2x32xf32>
    %218 = vector.extract_strided_slice %215 {offsets = [0, 64], sizes = [2, 32], strides = [1, 1]} : vector<2x128xf32> to vector<2x32xf32>
    %219 = vector.extract_strided_slice %215 {offsets = [0, 96], sizes = [2, 32], strides = [1, 1]} : vector<2x128xf32> to vector<2x32xf32>
    %220 = arith.mulf %217, %191 : vector<2x32xf32>
    %221 = arith.mulf %216, %219 : vector<2x32xf32>
    %222 = arith.addf %220, %221 : vector<2x32xf32>
    %223 = math.tanh %222 : vector<2x32xf32>
    %224 = arith.mulf %218, %223 : vector<2x32xf32>
    %225 = tpu.concatenate %224, %208 in 1 : vector<2x32xf32>, vector<2x32xf32> -> vector<2x64xf32>
    %cst_39 = arith.constant dense<0.000000e+00> : vector<2x128xf32>
    %226 = tpu.matmul %225, %16, %cst_39 {dimension_numbers = #tpu.dot_dimension_numbers<[1], [0], [0], [1], [0, 0, 1, 1], [], []>} : vector<2x64xf32>, vector<64x128xf32>, vector<2x128xf32> -> vector<2x128xf32>
    %227 = arith.addf %226, %19 : vector<2x128xf32>
    %228 = math.tanh %227 : vector<2x128xf32>
    %229 = arith.mulf %228, %5 : vector<2x128xf32>
    %230 = arith.addf %229, %8 : vector<2x128xf32>
    %231 = vector.extract_strided_slice %230 {offsets = [0, 0], sizes = [2, 32], strides = [1, 1]} : vector<2x128xf32> to vector<2x32xf32>
    %232 = vector.extract_strided_slice %230 {offsets = [0, 32], sizes = [2, 32], strides = [1, 1]} : vector<2x128xf32> to vector<2x32xf32>
    %233 = vector.extract_strided_slice %230 {offsets = [0, 64], sizes = [2, 32], strides = [1, 1]} : vector<2x128xf32> to vector<2x32xf32>
    %234 = vector.extract_strided_slice %230 {offsets = [0, 96], sizes = [2, 32], strides = [1, 1]} : vector<2x128xf32> to vector<2x32xf32>
    %235 = arith.mulf %232, %206 : vector<2x32xf32>
    %236 = arith.mulf %231, %234 : vector<2x32xf32>
    %237 = arith.addf %235, %236 : vector<2x32xf32>
    %238 = math.tanh %237 : vector<2x32xf32>
    %239 = arith.mulf %233, %238 : vector<2x32xf32>
    %c12 = arith.constant 12 : index
    %c0_40 = arith.constant 0 : index
    %240 = vector.load %arg11[%c12, %c0_40] : memref<16x32xf32, #tpu.memory_space<vmem>>, vector<2x32xf32>
    tpu.vector_store %arg11[%c12, %c0_40], %239 {strides = array<i32>} : memref<16x32xf32, #tpu.memory_space<vmem>>, vector<2x32xf32>,
    %241 = vector.extract_strided_slice %15 {offsets = [14, 0], sizes = [2, 128], strides = [1, 1]} : vector<16x128xf32> to vector<2x128xf32>
    %cst_41 = arith.constant dense<0.000000e+00> : vector<2x128xf32>
    %242 = tpu.matmul %224, %11, %cst_41 {dimension_numbers = #tpu.dot_dimension_numbers<[1], [0], [0], [1], [0, 0, 1, 1], [], []>} : vector<2x32xf32>, vector<32x128xf32>, vector<2x128xf32> -> vector<2x128xf32>
    %243 = arith.addf %241, %242 : vector<2x128xf32>
    %244 = math.tanh %243 : vector<2x128xf32>
    %245 = arith.mulf %244, %5 : vector<2x128xf32>
    %246 = arith.addf %245, %8 : vector<2x128xf32>
    %247 = vector.extract_strided_slice %246 {offsets = [0, 0], sizes = [2, 32], strides = [1, 1]} : vector<2x128xf32> to vector<2x32xf32>
    %248 = vector.extract_strided_slice %246 {offsets = [0, 32], sizes = [2, 32], strides = [1, 1]} : vector<2x128xf32> to vector<2x32xf32>
    %249 = vector.extract_strided_slice %246 {offsets = [0, 64], sizes = [2, 32], strides = [1, 1]} : vector<2x128xf32> to vector<2x32xf32>
    %250 = vector.extract_strided_slice %246 {offsets = [0, 96], sizes = [2, 32], strides = [1, 1]} : vector<2x128xf32> to vector<2x32xf32>
    %251 = arith.mulf %248, %222 : vector<2x32xf32>
    %252 = arith.mulf %247, %250 : vector<2x32xf32>
    %253 = arith.addf %251, %252 : vector<2x32xf32>
    %254 = math.tanh %253 : vector<2x32xf32>
    %255 = arith.mulf %249, %254 : vector<2x32xf32>
    %256 = tpu.concatenate %255, %239 in 1 : vector<2x32xf32>, vector<2x32xf32> -> vector<2x64xf32>
    %cst_42 = arith.constant dense<0.000000e+00> : vector<2x128xf32>
    %257 = tpu.matmul %256, %16, %cst_42 {dimension_numbers = #tpu.dot_dimension_numbers<[1], [0], [0], [1], [0, 0, 1, 1], [], []>} : vector<2x64xf32>, vector<64x128xf32>, vector<2x128xf32> -> vector<2x128xf32>
    %258 = arith.addf %257, %19 : vector<2x128xf32>
    %259 = math.tanh %258 : vector<2x128xf32>
    %260 = arith.mulf %259, %5 : vector<2x128xf32>
    %261 = arith.addf %260, %8 : vector<2x128xf32>
    %262 = vector.extract_strided_slice %261 {offsets = [0, 0], sizes = [2, 32], strides = [1, 1]} : vector<2x128xf32> to vector<2x32xf32>
    %263 = vector.extract_strided_slice %261 {offsets = [0, 32], sizes = [2, 32], strides = [1, 1]} : vector<2x128xf32> to vector<2x32xf32>
    %264 = vector.extract_strided_slice %261 {offsets = [0, 64], sizes = [2, 32], strides = [1, 1]} : vector<2x128xf32> to vector<2x32xf32>
    %265 = vector.extract_strided_slice %261 {offsets = [0, 96], sizes = [2, 32], strides = [1, 1]} : vector<2x128xf32> to vector<2x32xf32>
    %266 = arith.mulf %263, %237 : vector<2x32xf32>
    %267 = arith.mulf %262, %265 : vector<2x32xf32>
    %268 = arith.addf %266, %267 : vector<2x32xf32>
    %269 = math.tanh %268 : vector<2x32xf32>
    %270 = arith.mulf %264, %269 : vector<2x32xf32>
    %c14 = arith.constant 14 : index
    %c0_43 = arith.constant 0 : index
    %271 = vector.load %arg11[%c14, %c0_43] : memref<16x32xf32, #tpu.memory_space<vmem>>, vector<2x32xf32>
    tpu.vector_store %arg11[%c14, %c0_43], %270 {strides = array<i32>} : memref<16x32xf32, #tpu.memory_space<vmem>>, vector<2x32xf32>,
    %c0_44 = arith.constant 0 : index
    %c0_45 = arith.constant 0 : index
    %272 = vector.load %arg11[%c0_44, %c0_45] : memref<16x32xf32, #tpu.memory_space<vmem>>, vector<16x32xf32>
    %c0_46 = arith.constant 0 : index
    %c0_47 = arith.constant 0 : index
    %273 = vector.load %arg6[%c0_46, %c0_47] : memref<32x32xf32, #tpu.memory_space<vmem>>, vector<32x32xf32>
    %cst_48 = arith.constant dense<0.000000e+00> : vector<16x32xf32>
    %274 = tpu.matmul %272, %273, %cst_48 {dimension_numbers = #tpu.dot_dimension_numbers<[1], [0], [0], [1], [0, 0, 1, 1], [], []>} : vector<16x32xf32>, vector<32x32xf32>, vector<16x32xf32> -> vector<16x32xf32>
    %c0_49 = arith.constant 0 : index
    %c0_50 = arith.constant 0 : index
    %275 = vector.load %arg7[%c0_49, %c0_50] : memref<1x32xf32, #tpu.memory_space<vmem>>, vector<1x32xf32>
    %276 = vector.broadcast %275 : vector<1x32xf32> to vector<16x32xf32>
    %277 = arith.addf %274, %276 : vector<16x32xf32>
    %c0_51 = arith.constant 0 : index
    %c0_52 = arith.constant 0 : index
    %278 = vector.load %arg8[%c0_51, %c0_52] : memref<1x32xf32, #tpu.memory_space<vmem>>, vector<1x32xf32>
    %c0_53 = arith.constant 0 : index
    %c0_54 = arith.constant 0 : index
    %279 = vector.load %arg9[%c0_53, %c0_54] : memref<1x1xf32, #tpu.memory_space<vmem>>, vector<1x1xf32>
    %280 = vector.broadcast %278 : vector<1x32xf32> to vector<16x32xf32>
    %281 = arith.mulf %277, %280 : vector<16x32xf32>
    %cst_55 = arith.constant dense<0.000000e+00> : vector<16xf32>
    %282 = vector.multi_reduction <add>, %281, %cst_55 [1] : vector<16x32xf32> to vector<16xf32>
    %283 = vector.shape_cast %282 : vector<16xf32> to vector<16x1xf32>
    %284 = vector.broadcast %279 : vector<1x1xf32> to vector<16x1xf32>
    %285 = arith.addf %283, %284 : vector<16x1xf32>
    %c0_56 = arith.constant 0 : index
    %c0_57 = arith.constant 0 : index
    %286 = vector.load %arg10[%c0_56, %c0_57] : memref<16x1xf32, #tpu.memory_space<vmem>>, vector<16x1xf32>
    tpu.vector_store %arg10[%c0_56, %c0_57], %285 {strides = array<i32>} : memref<16x1xf32, #tpu.memory_space<vmem>>, vector<16x1xf32>,
    return
  }
}

</mosaic_0001>

<llo_original>
// kernel: regression_lstm_forward.1
$region0: #{regression_lstm_forward.1}
  #allocation0 [shape = 'u32[]', space=smem, size = 0x4, offset = 0x4, fixed_abs, tag = 'smem constant byte address 0x4 - core index']
  #allocation1 [shape = 'u32[144,128]{1,0:T(1,128)}', space=vmem, size = 0x12000, scoped, tag = 'internal scratch']
  #allocation2 [shape = 'f32[16,32]{1,0:T(8,128)}', space=vmem, size = 0x2000, scoped, tag = 'scratch operand']
  #allocation3 [shape = 'f32[1,1]{1,0:T(1,128)S(1)}', space=vmem, size = 0x200, scoped, tag = 'scoped memory for regression_lstm_forward.1']
  %s0 = inlined_call_operand.vmem [shape: f32[16,4], index: 0, kind: input, shape index: {}]
  %s1 = inlined_call_operand.vmem [shape: f32[4,128], index: 1, kind: input, shape index: {}]
  %s2 = inlined_call_operand.vmem [shape: f32[32,128], index: 2, kind: input, shape index: {}]
  %s3 = inlined_call_operand.vmem [shape: f32[1,128], index: 3, kind: input, shape index: {}]
  %s4 = inlined_call_operand.hbm [shape: f32[64,128], index: 4, kind: input, shape index: {}]
  %s5 = inlined_call_operand.vmem [shape: f32[1,128], index: 5, kind: input, shape index: {}]
  %s6 = inlined_call_operand.hbm [shape: f32[32,32], index: 6, kind: input, shape index: {}]
  %s7 = inlined_call_operand.vmem [shape: f32[1,32], index: 7, kind: input, shape index: {}]
  %s8 = inlined_call_operand.vmem [shape: f32[1,32], index: 8, kind: input, shape index: {}]
  %s9 = inlined_call_operand.<no memory space> [shape: f32[1,1], index: 9, kind: input, shape index: {}]
  %s10 = inlined_call_operand.vmem [shape: f32[16,1], index: 10, kind: output, shape index: {}]
  %s11 = sld [smem:[#allocation0]]
  $region58: #{regression_lstm_forward.1} parent=0
    _
  %s13 = ssub.s32 1, %s11
  %s14 = scalar_select 0, %s13, %s11
  %v15 = vstv %s9
  %16 = vst [vmem:[#allocation3] sm:$0x1] %v15
  $region1: #{regression_lstm_forward.1} parent=0
    #allocation4 [shape = 'u8[32768]{0}', space=vmem, size = 0x8000, scoped, tag = 'input window, operand 4, single buffered']
    #allocation5 [shape = 's32[1]{0}', space=sflag, size = 0x4, scoped, tag = 'scoped memory for regression_lstm_forward.1']
    #allocation6 [shape = 'u8[16384]{0}', space=vmem, size = 0x4000, scoped, tag = 'input window, operand 6, single buffered']
    #allocation7 [shape = 's32[1]{0}', space=sflag, size = 0x4, scoped, tag = 'scoped memory for regression_lstm_forward.1']
    %17 = vsyncpa [#allocation5], 0
    %18 = vsyncpa [#allocation7], 0
    // Predicated region
    $region2: #{regression_lstm_forward.1} parent=1 // pred_check
      _
    $region3: #{regression_lstm_forward.1} parent=1 // pred_check_branch
      %20 = sbr.rel (0) target = $region5
    $region4: #{regression_lstm_forward.1} parent=1 // pred_region
      _
    $region5: #{regression_lstm_forward.1} parent=1 // pred_fallthru
      _
    // Predicated region
    $region6: #{regression_lstm_forward.1} parent=1 // pred_check
      _
    $region7: #{regression_lstm_forward.1} parent=1 // pred_check_branch
      %22 = sbr.rel (0) target = $region9
    $region8: #{regression_lstm_forward.1} parent=1 // pred_region
      _
    $region9: #{regression_lstm_forward.1} parent=1 // pred_fallthru
      _
    // Predicated region
    $region10: #{regression_lstm_forward.1} parent=1 // pred_check
      _
    $region11: #{regression_lstm_forward.1} parent=1 // pred_check_branch
      %24 = sbr.rel (0) target = $region13
    $region12: #{regression_lstm_forward.1} parent=1 // pred_region
      _
    $region13: #{regression_lstm_forward.1} parent=1 // pred_fallthru
      _
    // Predicated region
    $region14: #{regression_lstm_forward.1} parent=1 // pred_check
      _
    $region15: #{regression_lstm_forward.1} parent=1 // pred_check_branch
      %26 = sbr.rel (0) target = $region17
    $region16: #{regression_lstm_forward.1} parent=1 // pred_region
      _
    $region17: #{regression_lstm_forward.1} parent=1 // pred_fallthru
      _
    // Predicated region
    $region18: #{regression_lstm_forward.1} parent=1 // pred_check
      _
    $region19: #{regression_lstm_forward.1} parent=1 // pred_check_branch
      %28 = sbr.rel (0) target = $region21
    $region20: #{regression_lstm_forward.1} parent=1 // pred_region
      %s30 = ssub.s32 1024, 1024
      %31 = vsyncadd [#allocation5], %s30
      %s32 = sshll.u32 [#allocation4], 4
      %s33 = int_to_ptr.vmem [resolvable:$true] %s32
      %38 = dma.hbm_to_vmem [thread:$0]  %s4, 1024, %s33, [#allocation5], 128, 128, 8
    $region21: #{regression_lstm_forward.1} parent=1 // pred_fallthru
      _
    // Predicated region
    $region22: #{regression_lstm_forward.1} parent=1 // pred_check
      _
    $region23: #{regression_lstm_forward.1} parent=1 // pred_check_branch
      %40 = sbr.rel (0) target = $region25
    $region24: #{regression_lstm_forward.1} parent=1 // pred_region
      _
    $region25: #{regression_lstm_forward.1} parent=1 // pred_fallthru
      _
    // Predicated region
    $region26: #{regression_lstm_forward.1} parent=1 // pred_check
      _
    $region27: #{regression_lstm_forward.1} parent=1 // pred_check_branch
      %42 = sbr.rel (0) target = $region29
    $region28: #{regression_lstm_forward.1} parent=1 // pred_region
      %s44 = ssub.s32 512, 512
      %45 = vsyncadd [#allocation7], %s44
      %s46 = sshll.u32 [#allocation6], 4
      %s47 = int_to_ptr.vmem [resolvable:$true] %s46
      %52 = dma.hbm_to_vmem [thread:$0]  %s6, 512, %s47, [#allocation7], 128, 128, 8
    $region29: #{regression_lstm_forward.1} parent=1 // pred_fallthru
      _
    // Predicated region
    $region30: #{regression_lstm_forward.1} parent=1 // pred_check
      _
    $region31: #{regression_lstm_forward.1} parent=1 // pred_check_branch
      %54 = sbr.rel (0) target = $region33
    $region32: #{regression_lstm_forward.1} parent=1 // pred_region
      _
    $region33: #{regression_lstm_forward.1} parent=1 // pred_fallthru
      _
    // Predicated region
    $region34: #{regression_lstm_forward.1} parent=1 // pred_check
      _
    $region35: #{regression_lstm_forward.1} parent=1 // pred_check_branch
      %56 = sbr.rel (0) target = $region37
    $region36: #{regression_lstm_forward.1} parent=1 // pred_region
      _
    $region37: #{regression_lstm_forward.1} parent=1 // pred_fallthru
      _
    // Predicated region
    $region38: #{regression_lstm_forward.1} parent=1 // pred_check
      _
    $region39: #{regression_lstm_forward.1} parent=1 // pred_check_branch
      %58 = sbr.rel (0) target = $region41
    $region40: #{regression_lstm_forward.1} parent=1 // pred_region
      _
    $region41: #{regression_lstm_forward.1} parent=1 // pred_fallthru
      _
    // Predicated region
    $region42: #{regression_lstm_forward.1} parent=1 // pred_check
      _
    $region43: #{regression_lstm_forward.1} parent=1 // pred_check_branch
      %60 = sbr.rel (0) target = $region45
    $region44: #{regression_lstm_forward.1} parent=1 // pred_region
      %61 = dma.done [#allocation5], 1024
    $region45: #{regression_lstm_forward.1} parent=1 // pred_fallthru
      _
    // Predicated region
    $region46: #{regression_lstm_forward.1} parent=1 // pred_check
      _
    $region47: #{regression_lstm_forward.1} parent=1 // pred_check_branch
      %63 = sbr.rel (0) target = $region49
    $region48: #{regression_lstm_forward.1} parent=1 // pred_region
      %64 = dma.done [#allocation7], 512
    $region49: #{regression_lstm_forward.1} parent=1 // pred_fallthru
      _
    %v65 = vlaneseq
    %v66 = vand.u32 %v65, 127
    %vm67 = vcmp.ge.s32.totalorder %v66, 96
    %v68 = vsel %vm67, 1.0, 0.5
    %v69 = vsel %vm67, 0.0, 0.5
    %v70 = vld [vmem:[%s0] sm:$0xff]
    %v71 = vld [vmem:[%s0 + $0x8] sm:$0xff]
    %v72 = vld [vmem:[%s1] sm:$0xf]
    %v73 = vld [vmem:[%s2] sm:$0xff]
    %v74 = vld [vmem:[%s2 + $0x8] sm:$0xff]
    %v75 = vld [vmem:[%s2 + $0x10] sm:$0xff]
    %v76 = vld [vmem:[%s2 + $0x18] sm:$0xff]
    %v77 = vld [vmem:[%s3] sm:$0x1]
    %v79 = vlaneseq
    %v80 = vshrl.u32 %v79, 7
    %v81 = vsub.s32 0, %v80
    %v82 = vrot.slane %v77, %v81
    %vm84 = vcmask 31744
    %v86 = vsel %vm84, %v70, 0
    %v89 = vsel %vm84, %v71, 0
    %vm91 = vcmask 1043456
    %v93 = vsel %vm91, %v72, 0
    %95 = vmatprep.subr.mxu0 0.0
    %96 = vmatpush1.msra.mxu0 %v93
    %97 = vmatprep.subr.mxu0 0.0
    %98 = vmatpush1.msra.mxu0 0.0
    %99 = vmatprep.subr.mxu0 0.0
    %100 = vmatpush1.msra.mxu0 0.0
    %101 = vmatprep.subr.mxu0 0.0
    %102 = vmatpush1.msra.mxu0 0.0
    %103 = vmatprep.subr.mxu0 0.0
    %104 = vmatpush1.msra.mxu0 0.0
    %105 = vmatprep.subr.mxu0 0.0
    %106 = vmatpush1.msra.mxu0 0.0
    %107 = vmatprep.subr.mxu0 0.0
    %108 = vmatpush1.msra.mxu0 0.0
    %109 = vmatprep.subr.mxu0 0.0
    %110 = vmatpush1.msra.mxu0 0.0
    %111 = vmatprep.subr.mxu0 0.0
    %112 = vmatpush1.msra.mxu0 0.0
    %113 = vmatprep.subr.mxu0 0.0
    %114 = vmatpush1.msra.mxu0 0.0
    %115 = vmatprep.subr.mxu0 0.0
    %116 = vmatpush1.msra.mxu0 0.0
    %117 = vmatprep.subr.mxu0 0.0
    %118 = vmatpush1.msra.mxu0 0.0
    %119 = vmatprep.subr.mxu0 0.0
    %120 = vmatpush1.msra.mxu0 0.0
    %121 = vmatprep.subr.mxu0 0.0
    %122 = vmatpush1.msra.mxu0 0.0
    %123 = vmatprep.subr.mxu0 0.0
    %124 = vmatpush1.msra.mxu0 0.0
    %125 = vmatprep.subr.mxu0 0.0
    %126 = vmatpush1.msra.mxu0 0.0
    %127 = vmatprep.subr.mxu0 0.0
    %128 = vmatpush1.msra.mxu0 0.0
    %129 = vmatprep.subr.mxu0 0.0
    %130 = vmatpush1.msra.mxu0 0.0
    %131 = vmatprep.subr.mxu0 0.0
    %132 = vmatpush1.msra.mxu0 0.0
    %133 = vmatprep.subr.mxu0 0.0
    %134 = vmatpush1.msra.mxu0 0.0
    %135 = vmatprep.subr.mxu0 0.0
    %136 = vmatpush1.msra.mxu0 0.0
    %137 = vmatprep.subr.mxu0 0.0
    %138 = vmatpush1.msra.mxu0 0.0
    %139 = vmatprep.subr.mxu0 0.0
    %140 = vmatpush1.msra.mxu0 0.0
    %141 = vmatprep.subr.mxu0 0.0
    %142 = vmatpush1.msra.mxu0 0.0
    %143 = vmatprep.subr.mxu0 0.0
    %144 = vmatpush1.msra.mxu0 0.0
    %145 = vmatprep.subr.mxu0 0.0
    %146 = vmatpush1.msra.mxu0 0.0
    %147 = vmatprep.subr.mxu0 0.0
    %148 = vmatpush1.msra.mxu0 0.0
    %149 = vmatprep.subr.mxu0 0.0
    %150 = vmatpush1.msra.mxu0 0.0
    %151 = vmatprep.subr.mxu0 0.0
    %152 = vmatpush1.msra.mxu0 0.0
    %153 = vmatprep.subr.mxu0 0.0
    %154 = vmatpush1.msra.mxu0 0.0
    %155 = vmatprep.subr.mxu0 0.0
    %156 = vmatpush1.msra.mxu0 0.0
    %157 = vmatprep.subr.mxu0 0.0
    %158 = vmatpush1.msra.mxu0 0.0
    %159 = vmatprep.mubr.f32.mxu0 0.0
    %160 = vmatmul.mubr.f32.gmra.mrb[0].mxu0 %v86
    %v161 = vpop.f32.mrb[0].mxu0
    %v162 = vadd.f32 %v82, %v161
    %v163 = vpop.f32.mrb[0].mxu0
    %164 = vmatprep.mubr.f32.mxu0 0.0
    %165 = vmatmul.mubr.f32.gmra.mrb[0].mxu0 %v89
    %v166 = vpop.f32.mrb[0].mxu0
    %v167 = vadd.f32 %v82, %v166
    %v168 = vpop.f32.mrb[0].mxu0
    %169 = vdwg.mxu0
    %v170 = vld [vmem:[#allocation4] sm:$0xff]
    %v171 = vld [vmem:[#allocation4 + $0x8] sm:$0xff]
    %v172 = vld [vmem:[#allocation4 + $0x10] sm:$0xff]
    %v173 = vld [vmem:[#allocation4 + $0x18] sm:$0xff]
    %v174 = vld [vmem:[#allocation4 + $0x20] sm:$0xff]
    %v175 = vld [vmem:[#allocation4 + $0x28] sm:$0xff]
    %v176 = vld [vmem:[#allocation4 + $0x30] sm:$0xff]
    %v177 = vld [vmem:[#allocation4 + $0x38] sm:$0xff]
    %v178 = vld [vmem:[%s5] sm:$0x1]
    %v180 = vlaneseq
    %v181 = vshrl.u32 %v180, 7
    %v182 = vsub.s32 0, %v181
    %v183 = vrot.slane %v178, %v182
    %vm185 = vcmask 261120
    %v187 = vsel %vm185, 0.0, 0
    %189 = vmatprep.subr.mxu0 0.0
    %190 = vmatpush1.msra.mxu0 %v73
    %191 = vmatprep.subr.mxu0 0.0
    %192 = vmatpush1.msra.mxu0 %v74
    %193 = vmatprep.subr.mxu0 0.0
    %194 = vmatpush1.msra.mxu0 %v75
    %195 = vmatprep.subr.mxu0 0.0
    %196 = vmatpush1.msra.mxu0 %v76
    %197 = vmatprep.subr.mxu0 0.0
    %198 = vmatpush1.msra.mxu0 0.0
    %199 = vmatprep.subr.mxu0 0.0
    %200 = vmatpush1.msra.mxu0 0.0
    %201 = vmatprep.subr.mxu0 0.0
    %202 = vmatpush1.msra.mxu0 0.0
    %203 = vmatprep.subr.mxu0 0.0
    %204 = vmatpush1.msra.mxu0 0.0
    %205 = vmatprep.subr.mxu0 0.0
    %206 = vmatpush1.msra.mxu0 0.0
    %207 = vmatprep.subr.mxu0 0.0
    %208 = vmatpush1.msra.mxu0 0.0
    %209 = vmatprep.subr.mxu0 0.0
    %210 = vmatpush1.msra.mxu0 0.0
    %211 = vmatprep.subr.mxu0 0.0
    %212 = vmatpush1.msra.mxu0 0.0
    %213 = vmatprep.subr.mxu0 0.0
    %214 = vmatpush1.msra.mxu0 0.0
    %215 = vmatprep.subr.mxu0 0.0
    %216 = vmatpush1.msra.mxu0 0.0
    %217 = vmatprep.subr.mxu0 0.0
    %218 = vmatpush1.msra.mxu0 0.0
    %219 = vmatprep.subr.mxu0 0.0
    %220 = vmatpush1.msra.mxu0 0.0
    %221 = vmatprep.subr.mxu0 0.0
    %222 = vmatpush1.msra.mxu0 0.0
    %223 = vmatprep.subr.mxu0 0.0
    %224 = vmatpush1.msra.mxu0 0.0
    %225 = vmatprep.subr.mxu0 0.0
    %226 = vmatpush1.msra.mxu0 0.0
    %227 = vmatprep.subr.mxu0 0.0
    %228 = vmatpush1.msra.mxu0 0.0
    %229 = vmatprep.subr.mxu0 0.0
    %230 = vmatpush1.msra.mxu0 0.0
    %231 = vmatprep.subr.mxu0 0.0
    %232 = vmatpush1.msra.mxu0 0.0
    %233 = vmatprep.subr.mxu0 0.0
    %234 = vmatpush1.msra.mxu0 0.0
    %235 = vmatprep.subr.mxu0 0.0
    %236 = vmatpush1.msra.mxu0 0.0
    %237 = vmatprep.subr.mxu0 0.0
    %238 = vmatpush1.msra.mxu0 0.0
    %239 = vmatprep.subr.mxu0 0.0
    %240 = vmatpush1.msra.mxu0 0.0
    %241 = vmatprep.subr.mxu0 0.0
    %242 = vmatpush1.msra.mxu0 0.0
    %243 = vmatprep.subr.mxu0 0.0
    %244 = vmatpush1.msra.mxu0 0.0
    %245 = vmatprep.subr.mxu0 0.0
    %246 = vmatpush1.msra.mxu0 0.0
    %247 = vmatprep.subr.mxu0 0.0
    %248 = vmatpush1.msra.mxu0 0.0
    %249 = vmatprep.subr.mxu0 0.0
    %250 = vmatpush1.msra.mxu0 0.0
    %251 = vmatprep.subr.mxu0 0.0
    %252 = vmatpush1.msra.mxu0 0.0
    %253 = vmatprep.mubr.f32.mxu0 0.0
    %254 = vmatmul.mubr.f32.gmra.mrb[0].mxu0 %v187
    %v255 = vpop.f32.mrb[0].mxu0
    %v256 = vadd.f32 0.0, %v255
    %v257 = vpop.f32.mrb[0].mxu0
    %258 = vdwg.mxu0
    %v259 = vadd.f32 %v162, %v256
    %v260 = vtanh.pop %v259
    %v261 = vmul.f32 %v260, %v68
    %v262 = vadd.f32 %v261, %v69
    %v263 = vmul.f32 %v262, 0.0
    %265 = vrot.lane.b32.xlu0 %v262, 32
    %v266 = vpop.permute.xlu0 %265
    %v268 = vmul.f32 %v262, %v266
    %270 = vrot.lane.b32.xlu0 %v268, 32
    %v271 = vpop.permute.xlu0 %270
    %v273 = vadd.f32 %v263, %v271
    %v274 = vtanh.pop %v273
    %276 = vrot.lane.b32.xlu0 %v274, 32
    %v277 = vpop.permute.xlu0 %276
    %v279 = vmul.f32 %v262, %v277
    %281 = vrot.lane.b32.xlu0 %v279, 64
    %v282 = vpop.permute.xlu0 %281
    %v284 = vsel %vm185, %v282, 0.0
    %vm285 = vcmask 523264
    %v287 = vsel %vm285, %v284, 0
    %289 = vmatprep.subr.mxu0 0.0
    %290 = vmatpush1.msra.mxu0 %v170
    %291 = vmatprep.subr.mxu0 0.0
    %292 = vmatpush1.msra.mxu0 %v171
    %293 = vmatprep.subr.mxu0 0.0
    %294 = vmatpush1.msra.mxu0 %v172
    %295 = vmatprep.subr.mxu0 0.0
    %296 = vmatpush1.msra.mxu0 %v173
    %297 = vmatprep.subr.mxu0 0.0
    %298 = vmatpush1.msra.mxu0 %v174
    %299 = vmatprep.subr.mxu0 0.0
    %300 = vmatpush1.msra.mxu0 %v175
    %301 = vmatprep.subr.mxu0 0.0
    %302 = vmatpush1.msra.mxu0 %v176
    %303 = vmatprep.subr.mxu0 0.0
    %304 = vmatpush1.msra.mxu0 %v177
    %305 = vmatprep.subr.mxu0 0.0
    %306 = vmatpush1.msra.mxu0 0.0
    %307 = vmatprep.subr.mxu0 0.0
    %308 = vmatpush1.msra.mxu0 0.0
    %309 = vmatprep.subr.mxu0 0.0
    %310 = vmatpush1.msra.mxu0 0.0
    %311 = vmatprep.subr.mxu0 0.0
    %312 = vmatpush1.msra.mxu0 0.0
    %313 = vmatprep.subr.mxu0 0.0
    %314 = vmatpush1.msra.mxu0 0.0
    %315 = vmatprep.subr.mxu0 0.0
    %316 = vmatpush1.msra.mxu0 0.0
    %317 = vmatprep.subr.mxu0 0.0
    %318 = vmatpush1.msra.mxu0 0.0
    %319 = vmatprep.subr.mxu0 0.0
    %320 = vmatpush1.msra.mxu0 0.0
    %321 = vmatprep.subr.mxu0 0.0
    %322 = vmatpush1.msra.mxu0 0.0
    %323 = vmatprep.subr.mxu0 0.0
    %324 = vmatpush1.msra.mxu0 0.0
    %325 = vmatprep.subr.mxu0 0.0
    %326 = vmatpush1.msra.mxu0 0.0
    %327 = vmatprep.subr.mxu0 0.0
    %328 = vmatpush1.msra.mxu0 0.0
    %329 = vmatprep.subr.mxu0 0.0
    %330 = vmatpush1.msra.mxu0 0.0
    %331 = vmatprep.subr.mxu0 0.0
    %332 = vmatpush1.msra.mxu0 0.0
    %333 = vmatprep.subr.mxu0 0.0
    %334 = vmatpush1.msra.mxu0 0.0
    %335 = vmatprep.subr.mxu0 0.0
    %336 = vmatpush1.msra.mxu0 0.0
    %337 = vmatprep.subr.mxu0 0.0
    %338 = vmatpush1.msra.mxu0 0.0
    %339 = vmatprep.subr.mxu0 0.0
    %340 = vmatpush1.msra.mxu0 0.0
    %341 = vmatprep.subr.mxu0 0.0
    %342 = vmatpush1.msra.mxu0 0.0
    %343 = vmatprep.subr.mxu0 0.0
    %344 = vmatpush1.msra.mxu0 0.0
    %345 = vmatprep.subr.mxu0 0.0
    %346 = vmatpush1.msra.mxu0 0.0
    %347 = vmatprep.subr.mxu0 0.0
    %348 = vmatpush1.msra.mxu0 0.0
    %349 = vmatprep.subr.mxu0 0.0
    %350 = vmatpush1.msra.mxu0 0.0
    %351 = vmatprep.subr.mxu0 0.0
    %352 = vmatpush1.msra.mxu0 0.0
    %353 = vmatprep.mubr.f32.mxu0 0.0
    %354 = vmatmul.mubr.f32.gmra.mrb[0].mxu0 %v287
    %v355 = vpop.f32.mrb[0].mxu0
    %v356 = vadd.f32 %v183, %v355
    %v357 = vpop.f32.mrb[0].mxu0
    %358 = vdwg.mxu0
    %v359 = vtanh.pop %v356
    %v360 = vmul.f32 %v359, %v68
    %v361 = vadd.f32 %v360, %v69
    %v362 = vmul.f32 %v361, 0.0
    %364 = vrot.lane.b32.xlu0 %v361, 32
    %v365 = vpop.permute.xlu0 %364
    %v367 = vmul.f32 %v361, %v365
    %369 = vrot.lane.b32.xlu0 %v367, 32
    %v370 = vpop.permute.xlu0 %369
    %v372 = vadd.f32 %v362, %v370
    %v373 = vtanh.pop %v372
    %375 = vrot.lane.b32.xlu0 %v373, 32
    %v376 = vpop.permute.xlu0 %375
    %v378 = vmul.f32 %v361, %v376
    %380 = vrot.lane.b32.xlu0 %v378, 64
    %v381 = vpop.permute.xlu0 %380
    %vm383 = vcmask 254976
    %384 = vst.msk [vmem:[#allocation2] sm:$0x3] %vm383, %v381
    %v385 = vsel %vm185, %v282, 0
    %387 = vmatprep.subr.mxu0 0.0
    %388 = vmatpush1.msra.mxu0 %v73
    %389 = vmatprep.subr.mxu0 0.0
    %390 = vmatpush1.msra.mxu0 %v74
    %391 = vmatprep.subr.mxu0 0.0
    %392 = vmatpush1.msra.mxu0 %v75
    %393 = vmatprep.subr.mxu0 0.0
    %394 = vmatpush1.msra.mxu0 %v76
    %395 = vmatprep.subr.mxu0 0.0
    %396 = vmatpush1.msra.mxu0 0.0
    %397 = vmatprep.subr.mxu0 0.0
    %398 = vmatpush1.msra.mxu0 0.0
    %399 = vmatprep.subr.mxu0 0.0
    %400 = vmatpush1.msra.mxu0 0.0
    %401 = vmatprep.subr.mxu0 0.0
    %402 = vmatpush1.msra.mxu0 0.0
    %403 = vmatprep.subr.mxu0 0.0
    %404 = vmatpush1.msra.mxu0 0.0
    %405 = vmatprep.subr.mxu0 0.0
    %406 = vmatpush1.msra.mxu0 0.0
    %407 = vmatprep.subr.mxu0 0.0
    %408 = vmatpush1.msra.mxu0 0.0
    %409 = vmatprep.subr.mxu0 0.0
    %410 = vmatpush1.msra.mxu0 0.0
    %411 = vmatprep.subr.mxu0 0.0
    %412 = vmatpush1.msra.mxu0 0.0
    %413 = vmatprep.subr.mxu0 0.0
    %414 = vmatpush1.msra.mxu0 0.0
    %415 = vmatprep.subr.mxu0 0.0
    %416 = vmatpush1.msra.mxu0 0.0
    %417 = vmatprep.subr.mxu0 0.0
    %418 = vmatpush1.msra.mxu0 0.0
    %419 = vmatprep.subr.mxu0 0.0
    %420 = vmatpush1.msra.mxu0 0.0
    %421 = vmatprep.subr.mxu0 0.0
    %422 = vmatpush1.msra.mxu0 0.0
    %423 = vmatprep.subr.mxu0 0.0
    %424 = vmatpush1.msra.mxu0 0.0
    %425 = vmatprep.subr.mxu0 0.0
    %426 = vmatpush1.msra.mxu0 0.0
    %427 = vmatprep.subr.mxu0 0.0
    %428 = vmatpush1.msra.mxu0 0.0
    %429 = vmatprep.subr.mxu0 0.0
    %430 = vmatpush1.msra.mxu0 0.0
    %431 = vmatprep.subr.mxu0 0.0
    %432 = vmatpush1.msra.mxu0 0.0
    %433 = vmatprep.subr.mxu0 0.0
    %434 = vmatpush1.msra.mxu0 0.0
    %435 = vmatprep.subr.mxu0 0.0
    %436 = vmatpush1.msra.mxu0 0.0
    %437 = vmatprep.subr.mxu0 0.0
    %438 = vmatpush1.msra.mxu0 0.0
    %439 = vmatprep.subr.mxu0 0.0
    %440 = vmatpush1.msra.mxu0 0.0
    %441 = vmatprep.subr.mxu0 0.0
    %442 = vmatpush1.msra.mxu0 0.0
    %443 = vmatprep.subr.mxu0 0.0
    %444 = vmatpush1.msra.mxu0 0.0
    %445 = vmatprep.subr.mxu0 0.0
    %446 = vmatpush1.msra.mxu0 0.0
    %447 = vmatprep.subr.mxu0 0.0
    %448 = vmatpush1.msra.mxu0 0.0
    %449 = vmatprep.subr.mxu0 0.0
    %450 = vmatpush1.msra.mxu0 0.0
    %451 = vmatprep.mubr.f32.mxu0 0.0
    %452 = vmatmul.mubr.f32.gmra.mrb[0].mxu0 %v385
    %v453 = vpop.f32.mrb[0].mxu0
    %v454 = vadd.f32 0.0, %v453
    %v455 = vpop.f32.mrb[0].mxu0
    %456 = vdwg.mxu0
    %v458 = vrot.slane %v454, 6
    %v460 = vadd.f32 %v162, %v458
    %v461 = vtanh.pop %v460
    %v462 = vmul.f32 %v461, %v68
    %v463 = vadd.f32 %v462, %v69
    %v465 = vrot.slane %v273, 6
    %v467 = vmul.f32 %v463, %v465
    %469 = vrot.lane.b32.xlu0 %v463, 32
    %v470 = vpop.permute.xlu0 %469
    %v472 = vmul.f32 %v463, %v470
    %474 = vrot.lane.b32.xlu0 %v472, 32
    %v475 = vpop.permute.xlu0 %474
    %v477 = vadd.f32 %v467, %v475
    %v478 = vtanh.pop %v477
    %480 = vrot.lane.b32.xlu0 %v478, 32
    %v481 = vpop.permute.xlu0 %480
    %v483 = vmul.f32 %v463, %v481
    %485 = vrot.lane.b32.xlu0 %v483, 64
    %v486 = vpop.permute.xlu0 %485
    %v488 = vrot.slane %v378, 6
    %489 = vrot.lane.b32.xlu0 %v488, 96
    %v490 = vpop.permute.xlu0 %489
    %v492 = vsel %vm185, %v486, %v490
    %v494 = vrot.slane %v492, 2
    %v495 = vsel %vm285, %v494, 0
    %497 = vmatprep.subr.mxu0 0.0
    %498 = vmatpush1.msra.mxu0 %v170
    %499 = vmatprep.subr.mxu0 0.0
    %500 = vmatpush1.msra.mxu0 %v171
    %501 = vmatprep.subr.mxu0 0.0
    %502 = vmatpush1.msra.mxu0 %v172
    %503 = vmatprep.subr.mxu0 0.0
    %504 = vmatpush1.msra.mxu0 %v173
    %505 = vmatprep.subr.mxu0 0.0
    %506 = vmatpush1.msra.mxu0 %v174
    %507 = vmatprep.subr.mxu0 0.0
    %508 = vmatpush1.msra.mxu0 %v175
    %509 = vmatprep.subr.mxu0 0.0
    %510 = vmatpush1.msra.mxu0 %v176
    %511 = vmatprep.subr.mxu0 0.0
    %512 = vmatpush1.msra.mxu0 %v177
    %513 = vmatprep.subr.mxu0 0.0
    %514 = vmatpush1.msra.mxu0 0.0
    %515 = vmatprep.subr.mxu0 0.0
    %516 = vmatpush1.msra.mxu0 0.0
    %517 = vmatprep.subr.mxu0 0.0
    %518 = vmatpush1.msra.mxu0 0.0
    %519 = vmatprep.subr.mxu0 0.0
    %520 = vmatpush1.msra.mxu0 0.0
    %521 = vmatprep.subr.mxu0 0.0
    %522 = vmatpush1.msra.mxu0 0.0
    %523 = vmatprep.subr.mxu0 0.0
    %524 = vmatpush1.msra.mxu0 0.0
    %525 = vmatprep.subr.mxu0 0.0
    %526 = vmatpush1.msra.mxu0 0.0
    %527 = vmatprep.subr.mxu0 0.0
    %528 = vmatpush1.msra.mxu0 0.0
    %529 = vmatprep.subr.mxu0 0.0
    %530 = vmatpush1.msra.mxu0 0.0
    %531 = vmatprep.subr.mxu0 0.0
    %532 = vmatpush1.msra.mxu0 0.0
    %533 = vmatprep.subr.mxu0 0.0
    %534 = vmatpush1.msra.mxu0 0.0
    %535 = vmatprep.subr.mxu0 0.0
    %536 = vmatpush1.msra.mxu0 0.0
    %537 = vmatprep.subr.mxu0 0.0
    %538 = vmatpush1.msra.mxu0 0.0
    %539 = vmatprep.subr.mxu0 0.0
    %540 = vmatpush1.msra.mxu0 0.0
    %541 = vmatprep.subr.mxu0 0.0
    %542 = vmatpush1.msra.mxu0 0.0
    %543 = vmatprep.subr.mxu0 0.0
    %544 = vmatpush1.msra.mxu0 0.0
    %545 = vmatprep.subr.mxu0 0.0
    %546 = vmatpush1.msra.mxu0 0.0
    %547 = vmatprep.subr.mxu0 0.0
    %548 = vmatpush1.msra.mxu0 0.0
    %549 = vmatprep.subr.mxu0 0.0
    %550 = vmatpush1.msra.mxu0 0.0
    %551 = vmatprep.subr.mxu0 0.0
    %552 = vmatpush1.msra.mxu0 0.0
    %553 = vmatprep.subr.mxu0 0.0
    %554 = vmatpush1.msra.mxu0 0.0
    %555 = vmatprep.subr.mxu0 0.0
    %556 = vmatpush1.msra.mxu0 0.0
    %557 = vmatprep.subr.mxu0 0.0
    %558 = vmatpush1.msra.mxu0 0.0
    %559 = vmatprep.subr.mxu0 0.0
    %560 = vmatpush1.msra.mxu0 0.0
    %561 = vmatprep.mubr.f32.mxu0 0.0
    %562 = vmatmul.mubr.f32.gmra.mrb[0].mxu0 %v495
    %v563 = vpop.f32.mrb[0].mxu0
    %v564 = vadd.f32 %v183, %v563
    %v565 = vpop.f32.mrb[0].mxu0
    %566 = vdwg.mxu0
    %v567 = vtanh.pop %v564
    %v568 = vmul.f32 %v567, %v68
    %v569 = vadd.f32 %v568, %v69
    %v570 = vmul.f32 %v569, %v372
    %572 = vrot.lane.b32.xlu0 %v569, 32
    %v573 = vpop.permute.xlu0 %572
    %v575 = vmul.f32 %v569, %v573
    %577 = vrot.lane.b32.xlu0 %v575, 32
    %v578 = vpop.permute.xlu0 %577
    %v580 = vadd.f32 %v570, %v578
    %v581 = vtanh.pop %v580
    %583 = vrot.lane.b32.xlu0 %v581, 32
    %v584 = vpop.permute.xlu0 %583
    %v586 = vmul.f32 %v569, %v584
    %588 = vrot.lane.b32.xlu0 %v586, 64
    %v589 = vpop.permute.xlu0 %588
    %591 = vst.msk [vmem:[#allocation2 + $0x2] sm:$0x3] %vm383, %v589
    %v592 = vrot.slane %v483, 2
    %593 = vrot.lane.b32.xlu0 %v592, 64
    %v594 = vpop.permute.xlu0 %593
    %v595 = vsel %vm185, %v594, 0
    %597 = vmatprep.subr.mxu0 0.0
    %598 = vmatpush1.msra.mxu0 %v73
    %599 = vmatprep.subr.mxu0 0.0
    %600 = vmatpush1.msra.mxu0 %v74
    %601 = vmatprep.subr.mxu0 0.0
    %602 = vmatpush1.msra.mxu0 %v75
    %603 = vmatprep.subr.mxu0 0.0
    %604 = vmatpush1.msra.mxu0 %v76
    %605 = vmatprep.subr.mxu0 0.0
    %606 = vmatpush1.msra.mxu0 0.0
    %607 = vmatprep.subr.mxu0 0.0
    %608 = vmatpush1.msra.mxu0 0.0
    %609 = vmatprep.subr.mxu0 0.0
    %610 = vmatpush1.msra.mxu0 0.0
    %611 = vmatprep.subr.mxu0 0.0
    %612 = vmatpush1.msra.mxu0 0.0
    %613 = vmatprep.subr.mxu0 0.0
    %614 = vmatpush1.msra.mxu0 0.0
    %615 = vmatprep.subr.mxu0 0.0
    %616 = vmatpush1.msra.mxu0 0.0
    %617 = vmatprep.subr.mxu0 0.0
    %618 = vmatpush1.msra.mxu0 0.0
    %619 = vmatprep.subr.mxu0 0.0
    %620 = vmatpush1.msra.mxu0 0.0
    %621 = vmatprep.subr.mxu0 0.0
    %622 = vmatpush1.msra.mxu0 0.0
    %623 = vmatprep.subr.mxu0 0.0
    %624 = vmatpush1.msra.mxu0 0.0
    %625 = vmatprep.subr.mxu0 0.0
    %626 = vmatpush1.msra.mxu0 0.0
    %627 = vmatprep.subr.mxu0 0.0
    %628 = vmatpush1.msra.mxu0 0.0
    %629 = vmatprep.subr.mxu0 0.0
    %630 = vmatpush1.msra.mxu0 0.0
    %631 = vmatprep.subr.mxu0 0.0
    %632 = vmatpush1.msra.mxu0 0.0
    %633 = vmatprep.subr.mxu0 0.0
    %634 = vmatpush1.msra.mxu0 0.0
    %635 = vmatprep.subr.mxu0 0.0
    %636 = vmatpush1.msra.mxu0 0.0
    %637 = vmatprep.subr.mxu0 0.0
    %638 = vmatpush1.msra.mxu0 0.0
    %639 = vmatprep.subr.mxu0 0.0
    %640 = vmatpush1.msra.mxu0 0.0
    %641 = vmatprep.subr.mxu0 0.0
    %642 = vmatpush1.msra.mxu0 0.0
    %643 = vmatprep.subr.mxu0 0.0
    %644 = vmatpush1.msra.mxu0 0.0
    %645 = vmatprep.subr.mxu0 0.0
    %646 = vmatpush1.msra.mxu0 0.0
    %647 = vmatprep.subr.mxu0 0.0
    %648 = vmatpush1.msra.mxu0 0.0
    %649 = vmatprep.subr.mxu0 0.0
    %650 = vmatpush1.msra.mxu0 0.0
    %651 = vmatprep.subr.mxu0 0.0
    %652 = vmatpush1.msra.mxu0 0.0
    %653 = vmatprep.subr.mxu0 0.0
    %654 = vmatpush1.msra.mxu0 0.0
    %655 = vmatprep.subr.mxu0 0.0
    %656 = vmatpush1.msra.mxu0 0.0
    %657 = vmatprep.subr.mxu0 0.0
    %658 = vmatpush1.msra.mxu0 0.0
    %659 = vmatprep.subr.mxu0 0.0
    %660 = vmatpush1.msra.mxu0 0.0
    %661 = vmatprep.mubr.f32.mxu0 0.0
    %662 = vmatmul.mubr.f32.gmra.mrb[0].mxu0 %v595
    %v663 = vpop.f32.mrb[0].mxu0
    %v664 = vadd.f32 0.0, %v663
    %v665 = vpop.f32.mrb[0].mxu0
    %666 = vdwg.mxu0
    %v668 = vrot.slane %v664, 4
    %v670 = vadd.f32 %v162, %v668
    %v671 = vtanh.pop %v670
    %v672 = vmul.f32 %v671, %v68
    %v673 = vadd.f32 %v672, %v69
    %v675 = vrot.slane %v477, 6
    %v677 = vmul.f32 %v673, %v675
    %679 = vrot.lane.b32.xlu0 %v673, 32
    %v680 = vpop.permute.xlu0 %679
    %v682 = vmul.f32 %v673, %v680
    %684 = vrot.lane.b32.xlu0 %v682, 32
    %v685 = vpop.permute.xlu0 %684
    %v687 = vadd.f32 %v677, %v685
    %v688 = vtanh.pop %v687
    %690 = vrot.lane.b32.xlu0 %v688, 32
    %v691 = vpop.permute.xlu0 %690
    %v693 = vmul.f32 %v673, %v691
    %695 = vrot.lane.b32.xlu0 %v693, 64
    %v696 = vpop.permute.xlu0 %695
    %v698 = vrot.slane %v586, 4
    %699 = vrot.lane.b32.xlu0 %v698, 96
    %v700 = vpop.permute.xlu0 %699
    %v702 = vsel %vm185, %v696, %v700
    %v704 = vrot.slane %v702, 4
    %v705 = vsel %vm285, %v704, 0
    %707 = vmatprep.subr.mxu0 0.0
    %708 = vmatpush1.msra.mxu0 %v170
    %709 = vmatprep.subr.mxu0 0.0
    %710 = vmatpush1.msra.mxu0 %v171
    %711 = vmatprep.subr.mxu0 0.0
    %712 = vmatpush1.msra.mxu0 %v172
    %713 = vmatprep.subr.mxu0 0.0
    %714 = vmatpush1.msra.mxu0 %v173
    %715 = vmatprep.subr.mxu0 0.0
    %716 = vmatpush1.msra.mxu0 %v174
    %717 = vmatprep.subr.mxu0 0.0
    %718 = vmatpush1.msra.mxu0 %v175
    %719 = vmatprep.subr.mxu0 0.0
    %720 = vmatpush1.msra.mxu0 %v176
    %721 = vmatprep.subr.mxu0 0.0
    %722 = vmatpush1.msra.mxu0 %v177
    %723 = vmatprep.subr.mxu0 0.0
    %724 = vmatpush1.msra.mxu0 0.0
    %725 = vmatprep.subr.mxu0 0.0
    %726 = vmatpush1.msra.mxu0 0.0
    %727 = vmatprep.subr.mxu0 0.0
    %728 = vmatpush1.msra.mxu0 0.0
    %729 = vmatprep.subr.mxu0 0.0
    %730 = vmatpush1.msra.mxu0 0.0
    %731 = vmatprep.subr.mxu0 0.0
    %732 = vmatpush1.msra.mxu0 0.0
    %733 = vmatprep.subr.mxu0 0.0
    %734 = vmatpush1.msra.mxu0 0.0
    %735 = vmatprep.subr.mxu0 0.0
    %736 = vmatpush1.msra.mxu0 0.0
    %737 = vmatprep.subr.mxu0 0.0
    %738 = vmatpush1.msra.mxu0 0.0
    %739 = vmatprep.subr.mxu0 0.0
    %740 = vmatpush1.msra.mxu0 0.0
    %741 = vmatprep.subr.mxu0 0.0
    %742 = vmatpush1.msra.mxu0 0.0
    %743 = vmatprep.subr.mxu0 0.0
    %744 = vmatpush1.msra.mxu0 0.0
    %745 = vmatprep.subr.mxu0 0.0
    %746 = vmatpush1.msra.mxu0 0.0
    %747 = vmatprep.subr.mxu0 0.0
    %748 = vmatpush1.msra.mxu0 0.0
    %749 = vmatprep.subr.mxu0 0.0
    %750 = vmatpush1.msra.mxu0 0.0
    %751 = vmatprep.subr.mxu0 0.0
    %752 = vmatpush1.msra.mxu0 0.0
    %753 = vmatprep.subr.mxu0 0.0
    %754 = vmatpush1.msra.mxu0 0.0
    %755 = vmatprep.subr.mxu0 0.0
    %756 = vmatpush1.msra.mxu0 0.0
    %757 = vmatprep.subr.mxu0 0.0
    %758 = vmatpush1.msra.mxu0 0.0
    %759 = vmatprep.subr.mxu0 0.0
    %760 = vmatpush1.msra.mxu0 0.0
    %761 = vmatprep.subr.mxu0 0.0
    %762 = vmatpush1.msra.mxu0 0.0
    %763 = vmatprep.subr.mxu0 0.0
    %764 = vmatpush1.msra.mxu0 0.0
    %765 = vmatprep.subr.mxu0 0.0
    %766 = vmatpush1.msra.mxu0 0.0
    %767 = vmatprep.subr.mxu0 0.0
    %768 = vmatpush1.msra.mxu0 0.0
    %769 = vmatprep.subr.mxu0 0.0
    %770 = vmatpush1.msra.mxu0 0.0
    %771 = vmatprep.mubr.f32.mxu0 0.0
    %772 = vmatmul.mubr.f32.gmra.mrb[0].mxu0 %v705
    %v773 = vpop.f32.mrb[0].mxu0
    %v774 = vadd.f32 %v183, %v773
    %v775 = vpop.f32.mrb[0].mxu0
    %776 = vdwg.mxu0
    %v777 = vtanh.pop %v774
    %v778 = vmul.f32 %v777, %v68
    %v779 = vadd.f32 %v778, %v69
    %v780 = vmul.f32 %v779, %v580
    %782 = vrot.lane.b32.xlu0 %v779, 32
    %v783 = vpop.permute.xlu0 %782
    %v785 = vmul.f32 %v779, %v783
    %787 = vrot.lane.b32.xlu0 %v785, 32
    %v788 = vpop.permute.xlu0 %787
    %v790 = vadd.f32 %v780, %v788
    %v791 = vtanh.pop %v790
    %793 = vrot.lane.b32.xlu0 %v791, 32
    %v794 = vpop.permute.xlu0 %793
    %v796 = vmul.f32 %v779, %v794
    %798 = vrot.lane.b32.xlu0 %v796, 64
    %v799 = vpop.permute.xlu0 %798
    %801 = vst.msk [vmem:[#allocation2 + $0x4] sm:$0x3] %vm383, %v799
    %v802 = vrot.slane %v693, 4
    %803 = vrot.lane.b32.xlu0 %v802, 64
    %v804 = vpop.permute.xlu0 %803
    %v805 = vsel %vm185, %v804, 0
    %807 = vmatprep.subr.mxu0 0.0
    %808 = vmatpush1.msra.mxu0 %v73
    %809 = vmatprep.subr.mxu0 0.0
    %810 = vmatpush1.msra.mxu0 %v74
    %811 = vmatprep.subr.mxu0 0.0
    %812 = vmatpush1.msra.mxu0 %v75
    %813 = vmatprep.subr.mxu0 0.0
    %814 = vmatpush1.msra.mxu0 %v76
    %815 = vmatprep.subr.mxu0 0.0
    %816 = vmatpush1.msra.mxu0 0.0
    %817 = vmatprep.subr.mxu0 0.0
    %818 = vmatpush1.msra.mxu0 0.0
    %819 = vmatprep.subr.mxu0 0.0
    %820 = vmatpush1.msra.mxu0 0.0
    %821 = vmatprep.subr.mxu0 0.0
    %822 = vmatpush1.msra.mxu0 0.0
    %823 = vmatprep.subr.mxu0 0.0
    %824 = vmatpush1.msra.mxu0 0.0
    %825 = vmatprep.subr.mxu0 0.0
    %826 = vmatpush1.msra.mxu0 0.0
    %827 = vmatprep.subr.mxu0 0.0
    %828 = vmatpush1.msra.mxu0 0.0
    %829 = vmatprep.subr.mxu0 0.0
    %830 = vmatpush1.msra.mxu0 0.0
    %831 = vmatprep.subr.mxu0 0.0
    %832 = vmatpush1.msra.mxu0 0.0
    %833 = vmatprep.subr.mxu0 0.0
    %834 = vmatpush1.msra.mxu0 0.0
    %835 = vmatprep.subr.mxu0 0.0
    %836 = vmatpush1.msra.mxu0 0.0
    %837 = vmatprep.subr.mxu0 0.0
    %838 = vmatpush1.msra.mxu0 0.0
    %839 = vmatprep.subr.mxu0 0.0
    %840 = vmatpush1.msra.mxu0 0.0
    %841 = vmatprep.subr.mxu0 0.0
    %842 = vmatpush1.msra.mxu0 0.0
    %843 = vmatprep.subr.mxu0 0.0
    %844 = vmatpush1.msra.mxu0 0.0
    %845 = vmatprep.subr.mxu0 0.0
    %846 = vmatpush1.msra.mxu0 0.0
    %847 = vmatprep.subr.mxu0 0.0
    %848 = vmatpush1.msra.mxu0 0.0
    %849 = vmatprep.subr.mxu0 0.0
    %850 = vmatpush1.msra.mxu0 0.0
    %851 = vmatprep.subr.mxu0 0.0
    %852 = vmatpush1.msra.mxu0 0.0
    %853 = vmatprep.subr.mxu0 0.0
    %854 = vmatpush1.msra.mxu0 0.0
    %855 = vmatprep.subr.mxu0 0.0
    %856 = vmatpush1.msra.mxu0 0.0
    %857 = vmatprep.subr.mxu0 0.0
    %858 = vmatpush1.msra.mxu0 0.0
    %859 = vmatprep.subr.mxu0 0.0
    %860 = vmatpush1.msra.mxu0 0.0
    %861 = vmatprep.subr.mxu0 0.0
    %862 = vmatpush1.msra.mxu0 0.0
    %863 = vmatprep.subr.mxu0 0.0
    %864 = vmatpush1.msra.mxu0 0.0
    %865 = vmatprep.subr.mxu0 0.0
    %866 = vmatpush1.msra.mxu0 0.0
    %867 = vmatprep.subr.mxu0 0.0
    %868 = vmatpush1.msra.mxu0 0.0
    %869 = vmatprep.subr.mxu0 0.0
    %870 = vmatpush1.msra.mxu0 0.0
    %871 = vmatprep.mubr.f32.mxu0 0.0
    %872 = vmatmul.mubr.f32.gmra.mrb[0].mxu0 %v805
    %v873 = vpop.f32.mrb[0].mxu0
    %v874 = vadd.f32 0.0, %v873
    %v875 = vpop.f32.mrb[0].mxu0
    %876 = vdwg.mxu0
    %v878 = vrot.slane %v874, 2
    %v880 = vadd.f32 %v162, %v878
    %v881 = vtanh.pop %v880
    %v882 = vmul.f32 %v881, %v68
    %v883 = vadd.f32 %v882, %v69
    %v885 = vrot.slane %v687, 6
    %v887 = vmul.f32 %v883, %v885
    %889 = vrot.lane.b32.xlu0 %v883, 32
    %v890 = vpop.permute.xlu0 %889
    %v892 = vmul.f32 %v883, %v890
    %894 = vrot.lane.b32.xlu0 %v892, 32
    %v895 = vpop.permute.xlu0 %894
    %v897 = vadd.f32 %v887, %v895
    %v898 = vtanh.pop %v897
    %900 = vrot.lane.b32.xlu0 %v898, 32
    %v901 = vpop.permute.xlu0 %900
    %v903 = vmul.f32 %v883, %v901
    %905 = vrot.lane.b32.xlu0 %v903, 64
    %v906 = vpop.permute.xlu0 %905
    %v908 = vrot.slane %v796, 2
    %909 = vrot.lane.b32.xlu0 %v908, 96
    %v910 = vpop.permute.xlu0 %909
    %v912 = vsel %vm185, %v906, %v910
    %v914 = vrot.slane %v912, 6
    %v915 = vsel %vm285, %v914, 0
    %917 = vmatprep.subr.mxu0 0.0
    %918 = vmatpush1.msra.mxu0 %v170
    %919 = vmatprep.subr.mxu0 0.0
    %920 = vmatpush1.msra.mxu0 %v171
    %921 = vmatprep.subr.mxu0 0.0
    %922 = vmatpush1.msra.mxu0 %v172
    %923 = vmatprep.subr.mxu0 0.0
    %924 = vmatpush1.msra.mxu0 %v173
    %925 = vmatprep.subr.mxu0 0.0
    %926 = vmatpush1.msra.mxu0 %v174
    %927 = vmatprep.subr.mxu0 0.0
    %928 = vmatpush1.msra.mxu0 %v175
    %929 = vmatprep.subr.mxu0 0.0
    %930 = vmatpush1.msra.mxu0 %v176
    %931 = vmatprep.subr.mxu0 0.0
    %932 = vmatpush1.msra.mxu0 %v177
    %933 = vmatprep.subr.mxu0 0.0
    %934 = vmatpush1.msra.mxu0 0.0
    %935 = vmatprep.subr.mxu0 0.0
    %936 = vmatpush1.msra.mxu0 0.0
    %937 = vmatprep.subr.mxu0 0.0
    %938 = vmatpush1.msra.mxu0 0.0
    %939 = vmatprep.subr.mxu0 0.0
    %940 = vmatpush1.msra.mxu0 0.0
    %941 = vmatprep.subr.mxu0 0.0
    %942 = vmatpush1.msra.mxu0 0.0
    %943 = vmatprep.subr.mxu0 0.0
    %944 = vmatpush1.msra.mxu0 0.0
    %945 = vmatprep.subr.mxu0 0.0
    %946 = vmatpush1.msra.mxu0 0.0
    %947 = vmatprep.subr.mxu0 0.0
    %948 = vmatpush1.msra.mxu0 0.0
    %949 = vmatprep.subr.mxu0 0.0
    %950 = vmatpush1.msra.mxu0 0.0
    %951 = vmatprep.subr.mxu0 0.0
    %952 = vmatpush1.msra.mxu0 0.0
    %953 = vmatprep.subr.mxu0 0.0
    %954 = vmatpush1.msra.mxu0 0.0
    %955 = vmatprep.subr.mxu0 0.0
    %956 = vmatpush1.msra.mxu0 0.0
    %957 = vmatprep.subr.mxu0 0.0
    %958 = vmatpush1.msra.mxu0 0.0
    %959 = vmatprep.subr.mxu0 0.0
    %960 = vmatpush1.msra.mxu0 0.0
    %961 = vmatprep.subr.mxu0 0.0
    %962 = vmatpush1.msra.mxu0 0.0
    %963 = vmatprep.subr.mxu0 0.0
    %964 = vmatpush1.msra.mxu0 0.0
    %965 = vmatprep.subr.mxu0 0.0
    %966 = vmatpush1.msra.mxu0 0.0
    %967 = vmatprep.subr.mxu0 0.0
    %968 = vmatpush1.msra.mxu0 0.0
    %969 = vmatprep.subr.mxu0 0.0
    %970 = vmatpush1.msra.mxu0 0.0
    %971 = vmatprep.subr.mxu0 0.0
    %972 = vmatpush1.msra.mxu0 0.0
    %973 = vmatprep.subr.mxu0 0.0
    %974 = vmatpush1.msra.mxu0 0.0
    %975 = vmatprep.subr.mxu0 0.0
    %976 = vmatpush1.msra.mxu0 0.0
    %977 = vmatprep.subr.mxu0 0.0
    %978 = vmatpush1.msra.mxu0 0.0
    %979 = vmatprep.subr.mxu0 0.0
    %980 = vmatpush1.msra.mxu0 0.0
    %981 = vmatprep.mubr.f32.mxu0 0.0
    %982 = vmatmul.mubr.f32.gmra.mrb[0].mxu0 %v915
    %v983 = vpop.f32.mrb[0].mxu0
    %v984 = vadd.f32 %v183, %v983
    %v985 = vpop.f32.mrb[0].mxu0
    %986 = vdwg.mxu0
    %v987 = vtanh.pop %v984
    %v988 = vmul.f32 %v987, %v68
    %v989 = vadd.f32 %v988, %v69
    %v990 = vmul.f32 %v989, %v790
    %992 = vrot.lane.b32.xlu0 %v989, 32
    %v993 = vpop.permute.xlu0 %992
    %v995 = vmul.f32 %v989, %v993
    %997 = vrot.lane.b32.xlu0 %v995, 32
    %v998 = vpop.permute.xlu0 %997
    %v1000 = vadd.f32 %v990, %v998
    %v1001 = vtanh.pop %v1000
    %1003 = vrot.lane.b32.xlu0 %v1001, 32
    %v1004 = vpop.permute.xlu0 %1003
    %v1006 = vmul.f32 %v989, %v1004
    %1008 = vrot.lane.b32.xlu0 %v1006, 64
    %v1009 = vpop.permute.xlu0 %1008
    %1011 = vst.msk [vmem:[#allocation2 + $0x6] sm:$0x3] %vm383, %v1009
    %v1012 = vrot.slane %v903, 6
    %1013 = vrot.lane.b32.xlu0 %v1012, 64
    %v1014 = vpop.permute.xlu0 %1013
    %v1015 = vsel %vm185, %v1014, 0
    %1017 = vmatprep.subr.mxu0 0.0
    %1018 = vmatpush1.msra.mxu0 %v73
    %1019 = vmatprep.subr.mxu0 0.0
    %1020 = vmatpush1.msra.mxu0 %v74
    %1021 = vmatprep.subr.mxu0 0.0
    %1022 = vmatpush1.msra.mxu0 %v75
    %1023 = vmatprep.subr.mxu0 0.0
    %1024 = vmatpush1.msra.mxu0 %v76
    %1025 = vmatprep.subr.mxu0 0.0
    %1026 = vmatpush1.msra.mxu0 0.0
    %1027 = vmatprep.subr.mxu0 0.0
    %1028 = vmatpush1.msra.mxu0 0.0
    %1029 = vmatprep.subr.mxu0 0.0
    %1030 = vmatpush1.msra.mxu0 0.0
    %1031 = vmatprep.subr.mxu0 0.0
    %1032 = vmatpush1.msra.mxu0 0.0
    %1033 = vmatprep.subr.mxu0 0.0
    %1034 = vmatpush1.msra.mxu0 0.0
    %1035 = vmatprep.subr.mxu0 0.0
    %1036 = vmatpush1.msra.mxu0 0.0
    %1037 = vmatprep.subr.mxu0 0.0
    %1038 = vmatpush1.msra.mxu0 0.0
    %1039 = vmatprep.subr.mxu0 0.0
    %1040 = vmatpush1.msra.mxu0 0.0
    %1041 = vmatprep.subr.mxu0 0.0
    %1042 = vmatpush1.msra.mxu0 0.0
    %1043 = vmatprep.subr.mxu0 0.0
    %1044 = vmatpush1.msra.mxu0 0.0
    %1045 = vmatprep.subr.mxu0 0.0
    %1046 = vmatpush1.msra.mxu0 0.0
    %1047 = vmatprep.subr.mxu0 0.0
    %1048 = vmatpush1.msra.mxu0 0.0
    %1049 = vmatprep.subr.mxu0 0.0
    %1050 = vmatpush1.msra.mxu0 0.0
    %1051 = vmatprep.subr.mxu0 0.0
    %1052 = vmatpush1.msra.mxu0 0.0
    %1053 = vmatprep.subr.mxu0 0.0
    %1054 = vmatpush1.msra.mxu0 0.0
    %1055 = vmatprep.subr.mxu0 0.0
    %1056 = vmatpush1.msra.mxu0 0.0
    %1057 = vmatprep.subr.mxu0 0.0
    %1058 = vmatpush1.msra.mxu0 0.0
    %1059 = vmatprep.subr.mxu0 0.0
    %1060 = vmatpush1.msra.mxu0 0.0
    %1061 = vmatprep.subr.mxu0 0.0
    %1062 = vmatpush1.msra.mxu0 0.0
    %1063 = vmatprep.subr.mxu0 0.0
    %1064 = vmatpush1.msra.mxu0 0.0
    %1065 = vmatprep.subr.mxu0 0.0
    %1066 = vmatpush1.msra.mxu0 0.0
    %1067 = vmatprep.subr.mxu0 0.0
    %1068 = vmatpush1.msra.mxu0 0.0
    %1069 = vmatprep.subr.mxu0 0.0
    %1070 = vmatpush1.msra.mxu0 0.0
    %1071 = vmatprep.subr.mxu0 0.0
    %1072 = vmatpush1.msra.mxu0 0.0
    %1073 = vmatprep.subr.mxu0 0.0
    %1074 = vmatpush1.msra.mxu0 0.0
    %1075 = vmatprep.subr.mxu0 0.0
    %1076 = vmatpush1.msra.mxu0 0.0
    %1077 = vmatprep.subr.mxu0 0.0
    %1078 = vmatpush1.msra.mxu0 0.0
    %1079 = vmatprep.subr.mxu0 0.0
    %1080 = vmatpush1.msra.mxu0 0.0
    %1081 = vmatprep.mubr.f32.mxu0 0.0
    %1082 = vmatmul.mubr.f32.gmra.mrb[0].mxu0 %v1015
    %v1083 = vpop.f32.mrb[0].mxu0
    %v1084 = vadd.f32 0.0, %v1083
    %v1085 = vpop.f32.mrb[0].mxu0
    %1086 = vdwg.mxu0
    %v1087 = vadd.f32 %v167, %v1084
    %v1088 = vtanh.pop %v1087
    %v1089 = vmul.f32 %v1088, %v68
    %v1090 = vadd.f32 %v1089, %v69
    %v1092 = vrot.slane %v897, 6
    %v1094 = vmul.f32 %v1090, %v1092
    %1096 = vrot.lane.b32.xlu0 %v1090, 32
    %v1097 = vpop.permute.xlu0 %1096
    %v1099 = vmul.f32 %v1090, %v1097
    %1101 = vrot.lane.b32.xlu0 %v1099, 32
    %v1102 = vpop.permute.xlu0 %1101
    %v1104 = vadd.f32 %v1094, %v1102
    %v1105 = vtanh.pop %v1104
    %1107 = vrot.lane.b32.xlu0 %v1105, 32
    %v1108 = vpop.permute.xlu0 %1107
    %v1110 = vmul.f32 %v1090, %v1108
    %1112 = vrot.lane.b32.xlu0 %v1110, 64
    %v1113 = vpop.permute.xlu0 %1112
    %1115 = vrot.lane.b32.xlu0 %v1006, 96
    %v1116 = vpop.permute.xlu0 %1115
    %v1118 = vsel %vm185, %v1113, %v1116
    %v1120 = vsel %vm285, %v1118, 0
    %1122 = vmatprep.subr.mxu0 0.0
    %1123 = vmatpush1.msra.mxu0 %v170
    %1124 = vmatprep.subr.mxu0 0.0
    %1125 = vmatpush1.msra.mxu0 %v171
    %1126 = vmatprep.subr.mxu0 0.0
    %1127 = vmatpush1.msra.mxu0 %v172
    %1128 = vmatprep.subr.mxu0 0.0
    %1129 = vmatpush1.msra.mxu0 %v173
    %1130 = vmatprep.subr.mxu0 0.0
    %1131 = vmatpush1.msra.mxu0 %v174
    %1132 = vmatprep.subr.mxu0 0.0
    %1133 = vmatpush1.msra.mxu0 %v175
    %1134 = vmatprep.subr.mxu0 0.0
    %1135 = vmatpush1.msra.mxu0 %v176
    %1136 = vmatprep.subr.mxu0 0.0
    %1137 = vmatpush1.msra.mxu0 %v177
    %1138 = vmatprep.subr.mxu0 0.0
    %1139 = vmatpush1.msra.mxu0 0.0
    %1140 = vmatprep.subr.mxu0 0.0
    %1141 = vmatpush1.msra.mxu0 0.0
    %1142 = vmatprep.subr.mxu0 0.0
    %1143 = vmatpush1.msra.mxu0 0.0
    %1144 = vmatprep.subr.mxu0 0.0
    %1145 = vmatpush1.msra.mxu0 0.0
    %1146 = vmatprep.subr.mxu0 0.0
    %1147 = vmatpush1.msra.mxu0 0.0
    %1148 = vmatprep.subr.mxu0 0.0
    %1149 = vmatpush1.msra.mxu0 0.0
    %1150 = vmatprep.subr.mxu0 0.0
    %1151 = vmatpush1.msra.mxu0 0.0
    %1152 = vmatprep.subr.mxu0 0.0
    %1153 = vmatpush1.msra.mxu0 0.0
    %1154 = vmatprep.subr.mxu0 0.0
    %1155 = vmatpush1.msra.mxu0 0.0
    %1156 = vmatprep.subr.mxu0 0.0
    %1157 = vmatpush1.msra.mxu0 0.0
    %1158 = vmatprep.subr.mxu0 0.0
    %1159 = vmatpush1.msra.mxu0 0.0
    %1160 = vmatprep.subr.mxu0 0.0
    %1161 = vmatpush1.msra.mxu0 0.0
    %1162 = vmatprep.subr.mxu0 0.0
    %1163 = vmatpush1.msra.mxu0 0.0
    %1164 = vmatprep.subr.mxu0 0.0
    %1165 = vmatpush1.msra.mxu0 0.0
    %1166 = vmatprep.subr.mxu0 0.0
    %1167 = vmatpush1.msra.mxu0 0.0
    %1168 = vmatprep.subr.mxu0 0.0
    %1169 = vmatpush1.msra.mxu0 0.0
    %1170 = vmatprep.subr.mxu0 0.0
    %1171 = vmatpush1.msra.mxu0 0.0
    %1172 = vmatprep.subr.mxu0 0.0
    %1173 = vmatpush1.msra.mxu0 0.0
    %1174 = vmatprep.subr.mxu0 0.0
    %1175 = vmatpush1.msra.mxu0 0.0
    %1176 = vmatprep.subr.mxu0 0.0
    %1177 = vmatpush1.msra.mxu0 0.0
    %1178 = vmatprep.subr.mxu0 0.0
    %1179 = vmatpush1.msra.mxu0 0.0
    %1180 = vmatprep.subr.mxu0 0.0
    %1181 = vmatpush1.msra.mxu0 0.0
    %1182 = vmatprep.subr.mxu0 0.0
    %1183 = vmatpush1.msra.mxu0 0.0
    %1184 = vmatprep.subr.mxu0 0.0
    %1185 = vmatpush1.msra.mxu0 0.0
    %1186 = vmatprep.mubr.f32.mxu0 0.0
    %1187 = vmatmul.mubr.f32.gmra.mrb[0].mxu0 %v1120
    %v1188 = vpop.f32.mrb[0].mxu0
    %v1189 = vadd.f32 %v183, %v1188
    %v1190 = vpop.f32.mrb[0].mxu0
    %1191 = vdwg.mxu0
    %v1192 = vtanh.pop %v1189
    %v1193 = vmul.f32 %v1192, %v68
    %v1194 = vadd.f32 %v1193, %v69
    %v1195 = vmul.f32 %v1194, %v1000
    %1197 = vrot.lane.b32.xlu0 %v1194, 32
    %v1198 = vpop.permute.xlu0 %1197
    %v1200 = vmul.f32 %v1194, %v1198
    %1202 = vrot.lane.b32.xlu0 %v1200, 32
    %v1203 = vpop.permute.xlu0 %1202
    %v1205 = vadd.f32 %v1195, %v1203
    %v1206 = vtanh.pop %v1205
    %1208 = vrot.lane.b32.xlu0 %v1206, 32
    %v1209 = vpop.permute.xlu0 %1208
    %v1211 = vmul.f32 %v1194, %v1209
    %1213 = vrot.lane.b32.xlu0 %v1211, 64
    %v1214 = vpop.permute.xlu0 %1213
    %1216 = vst.msk [vmem:[#allocation2 + $0x8] sm:$0x3] %vm383, %v1214
    %v1217 = vsel %vm185, %v1113, 0
    %1219 = vmatprep.subr.mxu0 0.0
    %1220 = vmatpush1.msra.mxu0 %v73
    %1221 = vmatprep.subr.mxu0 0.0
    %1222 = vmatpush1.msra.mxu0 %v74
    %1223 = vmatprep.subr.mxu0 0.0
    %1224 = vmatpush1.msra.mxu0 %v75
    %1225 = vmatprep.subr.mxu0 0.0
    %1226 = vmatpush1.msra.mxu0 %v76
    %1227 = vmatprep.subr.mxu0 0.0
    %1228 = vmatpush1.msra.mxu0 0.0
    %1229 = vmatprep.subr.mxu0 0.0
    %1230 = vmatpush1.msra.mxu0 0.0
    %1231 = vmatprep.subr.mxu0 0.0
    %1232 = vmatpush1.msra.mxu0 0.0
    %1233 = vmatprep.subr.mxu0 0.0
    %1234 = vmatpush1.msra.mxu0 0.0
    %1235 = vmatprep.subr.mxu0 0.0
    %1236 = vmatpush1.msra.mxu0 0.0
    %1237 = vmatprep.subr.mxu0 0.0
    %1238 = vmatpush1.msra.mxu0 0.0
    %1239 = vmatprep.subr.mxu0 0.0
    %1240 = vmatpush1.msra.mxu0 0.0
    %1241 = vmatprep.subr.mxu0 0.0
    %1242 = vmatpush1.msra.mxu0 0.0
    %1243 = vmatprep.subr.mxu0 0.0
    %1244 = vmatpush1.msra.mxu0 0.0
    %1245 = vmatprep.subr.mxu0 0.0
    %1246 = vmatpush1.msra.mxu0 0.0
    %1247 = vmatprep.subr.mxu0 0.0
    %1248 = vmatpush1.msra.mxu0 0.0
    %1249 = vmatprep.subr.mxu0 0.0
    %1250 = vmatpush1.msra.mxu0 0.0
    %1251 = vmatprep.subr.mxu0 0.0
    %1252 = vmatpush1.msra.mxu0 0.0
    %1253 = vmatprep.subr.mxu0 0.0
    %1254 = vmatpush1.msra.mxu0 0.0
    %1255 = vmatprep.subr.mxu0 0.0
    %1256 = vmatpush1.msra.mxu0 0.0
    %1257 = vmatprep.subr.mxu0 0.0
    %1258 = vmatpush1.msra.mxu0 0.0
    %1259 = vmatprep.subr.mxu0 0.0
    %1260 = vmatpush1.msra.mxu0 0.0
    %1261 = vmatprep.subr.mxu0 0.0
    %1262 = vmatpush1.msra.mxu0 0.0
    %1263 = vmatprep.subr.mxu0 0.0
    %1264 = vmatpush1.msra.mxu0 0.0
    %1265 = vmatprep.subr.mxu0 0.0
    %1266 = vmatpush1.msra.mxu0 0.0
    %1267 = vmatprep.subr.mxu0 0.0
    %1268 = vmatpush1.msra.mxu0 0.0
    %1269 = vmatprep.subr.mxu0 0.0
    %1270 = vmatpush1.msra.mxu0 0.0
    %1271 = vmatprep.subr.mxu0 0.0
    %1272 = vmatpush1.msra.mxu0 0.0
    %1273 = vmatprep.subr.mxu0 0.0
    %1274 = vmatpush1.msra.mxu0 0.0
    %1275 = vmatprep.subr.mxu0 0.0
    %1276 = vmatpush1.msra.mxu0 0.0
    %1277 = vmatprep.subr.mxu0 0.0
    %1278 = vmatpush1.msra.mxu0 0.0
    %1279 = vmatprep.subr.mxu0 0.0
    %1280 = vmatpush1.msra.mxu0 0.0
    %1281 = vmatprep.subr.mxu0 0.0
    %1282 = vmatpush1.msra.mxu0 0.0
    %1283 = vmatprep.mubr.f32.mxu0 0.0
    %1284 = vmatmul.mubr.f32.gmra.mrb[0].mxu0 %v1217
    %v1285 = vpop.f32.mrb[0].mxu0
    %v1286 = vadd.f32 0.0, %v1285
    %v1287 = vpop.f32.mrb[0].mxu0
    %1288 = vdwg.mxu0
    %v1290 = vrot.slane %v1286, 6
    %v1292 = vadd.f32 %v167, %v1290
    %v1293 = vtanh.pop %v1292
    %v1294 = vmul.f32 %v1293, %v68
    %v1295 = vadd.f32 %v1294, %v69
    %v1297 = vrot.slane %v1104, 6
    %v1299 = vmul.f32 %v1295, %v1297
    %1301 = vrot.lane.b32.xlu0 %v1295, 32
    %v1302 = vpop.permute.xlu0 %1301
    %v1304 = vmul.f32 %v1295, %v1302
    %1306 = vrot.lane.b32.xlu0 %v1304, 32
    %v1307 = vpop.permute.xlu0 %1306
    %v1309 = vadd.f32 %v1299, %v1307
    %v1310 = vtanh.pop %v1309
    %1312 = vrot.lane.b32.xlu0 %v1310, 32
    %v1313 = vpop.permute.xlu0 %1312
    %v1315 = vmul.f32 %v1295, %v1313
    %1317 = vrot.lane.b32.xlu0 %v1315, 64
    %v1318 = vpop.permute.xlu0 %1317
    %v1320 = vrot.slane %v1211, 6
    %1321 = vrot.lane.b32.xlu0 %v1320, 96
    %v1322 = vpop.permute.xlu0 %1321
    %v1324 = vsel %vm185, %v1318, %v1322
    %v1326 = vrot.slane %v1324, 2
    %v1327 = vsel %vm285, %v1326, 0
    %1329 = vmatprep.subr.mxu0 0.0
    %1330 = vmatpush1.msra.mxu0 %v170
    %1331 = vmatprep.subr.mxu0 0.0
    %1332 = vmatpush1.msra.mxu0 %v171
    %1333 = vmatprep.subr.mxu0 0.0
    %1334 = vmatpush1.msra.mxu0 %v172
    %1335 = vmatprep.subr.mxu0 0.0
    %1336 = vmatpush1.msra.mxu0 %v173
    %1337 = vmatprep.subr.mxu0 0.0
    %1338 = vmatpush1.msra.mxu0 %v174
    %1339 = vmatprep.subr.mxu0 0.0
    %1340 = vmatpush1.msra.mxu0 %v175
    %1341 = vmatprep.subr.mxu0 0.0
    %1342 = vmatpush1.msra.mxu0 %v176
    %1343 = vmatprep.subr.mxu0 0.0
    %1344 = vmatpush1.msra.mxu0 %v177
    %1345 = vmatprep.subr.mxu0 0.0
    %1346 = vmatpush1.msra.mxu0 0.0
    %1347 = vmatprep.subr.mxu0 0.0
    %1348 = vmatpush1.msra.mxu0 0.0
    %1349 = vmatprep.subr.mxu0 0.0
    %1350 = vmatpush1.msra.mxu0 0.0
    %1351 = vmatprep.subr.mxu0 0.0
    %1352 = vmatpush1.msra.mxu0 0.0
    %1353 = vmatprep.subr.mxu0 0.0
    %1354 = vmatpush1.msra.mxu0 0.0
    %1355 = vmatprep.subr.mxu0 0.0
    %1356 = vmatpush1.msra.mxu0 0.0
    %1357 = vmatprep.subr.mxu0 0.0
    %1358 = vmatpush1.msra.mxu0 0.0
    %1359 = vmatprep.subr.mxu0 0.0
    %1360 = vmatpush1.msra.mxu0 0.0
    %1361 = vmatprep.subr.mxu0 0.0
    %1362 = vmatpush1.msra.mxu0 0.0
    %1363 = vmatprep.subr.mxu0 0.0
    %1364 = vmatpush1.msra.mxu0 0.0
    %1365 = vmatprep.subr.mxu0 0.0
    %1366 = vmatpush1.msra.mxu0 0.0
    %1367 = vmatprep.subr.mxu0 0.0
    %1368 = vmatpush1.msra.mxu0 0.0
    %1369 = vmatprep.subr.mxu0 0.0
    %1370 = vmatpush1.msra.mxu0 0.0
    %1371 = vmatprep.subr.mxu0 0.0
    %1372 = vmatpush1.msra.mxu0 0.0
    %1373 = vmatprep.subr.mxu0 0.0
    %1374 = vmatpush1.msra.mxu0 0.0
    %1375 = vmatprep.subr.mxu0 0.0
    %1376 = vmatpush1.msra.mxu0 0.0
    %1377 = vmatprep.subr.mxu0 0.0
    %1378 = vmatpush1.msra.mxu0 0.0
    %1379 = vmatprep.subr.mxu0 0.0
    %1380 = vmatpush1.msra.mxu0 0.0
    %1381 = vmatprep.subr.mxu0 0.0
    %1382 = vmatpush1.msra.mxu0 0.0
    %1383 = vmatprep.subr.mxu0 0.0
    %1384 = vmatpush1.msra.mxu0 0.0
    %1385 = vmatprep.subr.mxu0 0.0
    %1386 = vmatpush1.msra.mxu0 0.0
    %1387 = vmatprep.subr.mxu0 0.0
    %1388 = vmatpush1.msra.mxu0 0.0
    %1389 = vmatprep.subr.mxu0 0.0
    %1390 = vmatpush1.msra.mxu0 0.0
    %1391 = vmatprep.subr.mxu0 0.0
    %1392 = vmatpush1.msra.mxu0 0.0
    %1393 = vmatprep.mubr.f32.mxu0 0.0
    %1394 = vmatmul.mubr.f32.gmra.mrb[0].mxu0 %v1327
    %v1395 = vpop.f32.mrb[0].mxu0
    %v1396 = vadd.f32 %v183, %v1395
    %v1397 = vpop.f32.mrb[0].mxu0
    %1398 = vdwg.mxu0
    %v1399 = vtanh.pop %v1396
    %v1400 = vmul.f32 %v1399, %v68
    %v1401 = vadd.f32 %v1400, %v69
    %v1402 = vmul.f32 %v1401, %v1205
    %1404 = vrot.lane.b32.xlu0 %v1401, 32
    %v1405 = vpop.permute.xlu0 %1404
    %v1407 = vmul.f32 %v1401, %v1405
    %1409 = vrot.lane.b32.xlu0 %v1407, 32
    %v1410 = vpop.permute.xlu0 %1409
    %v1412 = vadd.f32 %v1402, %v1410
    %v1413 = vtanh.pop %v1412
    %1415 = vrot.lane.b32.xlu0 %v1413, 32
    %v1416 = vpop.permute.xlu0 %1415
    %v1418 = vmul.f32 %v1401, %v1416
    %1420 = vrot.lane.b32.xlu0 %v1418, 64
    %v1421 = vpop.permute.xlu0 %1420
    %1423 = vst.msk [vmem:[#allocation2 + $0xa] sm:$0x3] %vm383, %v1421
    %v1424 = vrot.slane %v1315, 2
    %1425 = vrot.lane.b32.xlu0 %v1424, 64
    %v1426 = vpop.permute.xlu0 %1425
    %v1427 = vsel %vm185, %v1426, 0
    %1429 = vmatprep.subr.mxu0 0.0
    %1430 = vmatpush1.msra.mxu0 %v73
    %1431 = vmatprep.subr.mxu0 0.0
    %1432 = vmatpush1.msra.mxu0 %v74
    %1433 = vmatprep.subr.mxu0 0.0
    %1434 = vmatpush1.msra.mxu0 %v75
    %1435 = vmatprep.subr.mxu0 0.0
    %1436 = vmatpush1.msra.mxu0 %v76
    %1437 = vmatprep.subr.mxu0 0.0
    %1438 = vmatpush1.msra.mxu0 0.0
    %1439 = vmatprep.subr.mxu0 0.0
    %1440 = vmatpush1.msra.mxu0 0.0
    %1441 = vmatprep.subr.mxu0 0.0
    %1442 = vmatpush1.msra.mxu0 0.0
    %1443 = vmatprep.subr.mxu0 0.0
    %1444 = vmatpush1.msra.mxu0 0.0
    %1445 = vmatprep.subr.mxu0 0.0
    %1446 = vmatpush1.msra.mxu0 0.0
    %1447 = vmatprep.subr.mxu0 0.0
    %1448 = vmatpush1.msra.mxu0 0.0
    %1449 = vmatprep.subr.mxu0 0.0
    %1450 = vmatpush1.msra.mxu0 0.0
    %1451 = vmatprep.subr.mxu0 0.0
    %1452 = vmatpush1.msra.mxu0 0.0
    %1453 = vmatprep.subr.mxu0 0.0
    %1454 = vmatpush1.msra.mxu0 0.0
    %1455 = vmatprep.subr.mxu0 0.0
    %1456 = vmatpush1.msra.mxu0 0.0
    %1457 = vmatprep.subr.mxu0 0.0
    %1458 = vmatpush1.msra.mxu0 0.0
    %1459 = vmatprep.subr.mxu0 0.0
    %1460 = vmatpush1.msra.mxu0 0.0
    %1461 = vmatprep.subr.mxu0 0.0
    %1462 = vmatpush1.msra.mxu0 0.0
    %1463 = vmatprep.subr.mxu0 0.0
    %1464 = vmatpush1.msra.mxu0 0.0
    %1465 = vmatprep.subr.mxu0 0.0
    %1466 = vmatpush1.msra.mxu0 0.0
    %1467 = vmatprep.subr.mxu0 0.0
    %1468 = vmatpush1.msra.mxu0 0.0
    %1469 = vmatprep.subr.mxu0 0.0
    %1470 = vmatpush1.msra.mxu0 0.0
    %1471 = vmatprep.subr.mxu0 0.0
    %1472 = vmatpush1.msra.mxu0 0.0
    %1473 = vmatprep.subr.mxu0 0.0
    %1474 = vmatpush1.msra.mxu0 0.0
    %1475 = vmatprep.subr.mxu0 0.0
    %1476 = vmatpush1.msra.mxu0 0.0
    %1477 = vmatprep.subr.mxu0 0.0
    %1478 = vmatpush1.msra.mxu0 0.0
    %1479 = vmatprep.subr.mxu0 0.0
    %1480 = vmatpush1.msra.mxu0 0.0
    %1481 = vmatprep.subr.mxu0 0.0
    %1482 = vmatpush1.msra.mxu0 0.0
    %1483 = vmatprep.subr.mxu0 0.0
    %1484 = vmatpush1.msra.mxu0 0.0
    %1485 = vmatprep.subr.mxu0 0.0
    %1486 = vmatpush1.msra.mxu0 0.0
    %1487 = vmatprep.subr.mxu0 0.0
    %1488 = vmatpush1.msra.mxu0 0.0
    %1489 = vmatprep.subr.mxu0 0.0
    %1490 = vmatpush1.msra.mxu0 0.0
    %1491 = vmatprep.subr.mxu0 0.0
    %1492 = vmatpush1.msra.mxu0 0.0
    %1493 = vmatprep.mubr.f32.mxu0 0.0
    %1494 = vmatmul.mubr.f32.gmra.mrb[0].mxu0 %v1427
    %v1495 = vpop.f32.mrb[0].mxu0
    %v1496 = vadd.f32 0.0, %v1495
    %v1497 = vpop.f32.mrb[0].mxu0
    %1498 = vdwg.mxu0
    %v1500 = vrot.slane %v1496, 4
    %v1502 = vadd.f32 %v167, %v1500
    %v1503 = vtanh.pop %v1502
    %v1504 = vmul.f32 %v1503, %v68
    %v1505 = vadd.f32 %v1504, %v69
    %v1507 = vrot.slane %v1309, 6
    %v1509 = vmul.f32 %v1505, %v1507
    %1511 = vrot.lane.b32.xlu0 %v1505, 32
    %v1512 = vpop.permute.xlu0 %1511
    %v1514 = vmul.f32 %v1505, %v1512
    %1516 = vrot.lane.b32.xlu0 %v1514, 32
    %v1517 = vpop.permute.xlu0 %1516
    %v1519 = vadd.f32 %v1509, %v1517
    %v1520 = vtanh.pop %v1519
    %1522 = vrot.lane.b32.xlu0 %v1520, 32
    %v1523 = vpop.permute.xlu0 %1522
    %v1525 = vmul.f32 %v1505, %v1523
    %1527 = vrot.lane.b32.xlu0 %v1525, 64
    %v1528 = vpop.permute.xlu0 %1527
    %v1530 = vrot.slane %v1418, 4
    %1531 = vrot.lane.b32.xlu0 %v1530, 96
    %v1532 = vpop.permute.xlu0 %1531
    %v1534 = vsel %vm185, %v1528, %v1532
    %v1536 = vrot.slane %v1534, 4
    %v1537 = vsel %vm285, %v1536, 0
    %1539 = vmatprep.subr.mxu0 0.0
    %1540 = vmatpush1.msra.mxu0 %v170
    %1541 = vmatprep.subr.mxu0 0.0
    %1542 = vmatpush1.msra.mxu0 %v171
    %1543 = vmatprep.subr.mxu0 0.0
    %1544 = vmatpush1.msra.mxu0 %v172
    %1545 = vmatprep.subr.mxu0 0.0
    %1546 = vmatpush1.msra.mxu0 %v173
    %1547 = vmatprep.subr.mxu0 0.0
    %1548 = vmatpush1.msra.mxu0 %v174
    %1549 = vmatprep.subr.mxu0 0.0
    %1550 = vmatpush1.msra.mxu0 %v175
    %1551 = vmatprep.subr.mxu0 0.0
    %1552 = vmatpush1.msra.mxu0 %v176
    %1553 = vmatprep.subr.mxu0 0.0
    %1554 = vmatpush1.msra.mxu0 %v177
    %1555 = vmatprep.subr.mxu0 0.0
    %1556 = vmatpush1.msra.mxu0 0.0
    %1557 = vmatprep.subr.mxu0 0.0
    %1558 = vmatpush1.msra.mxu0 0.0
    %1559 = vmatprep.subr.mxu0 0.0
    %1560 = vmatpush1.msra.mxu0 0.0
    %1561 = vmatprep.subr.mxu0 0.0
    %1562 = vmatpush1.msra.mxu0 0.0
    %1563 = vmatprep.subr.mxu0 0.0
    %1564 = vmatpush1.msra.mxu0 0.0
    %1565 = vmatprep.subr.mxu0 0.0
    %1566 = vmatpush1.msra.mxu0 0.0
    %1567 = vmatprep.subr.mxu0 0.0
    %1568 = vmatpush1.msra.mxu0 0.0
    %1569 = vmatprep.subr.mxu0 0.0
    %1570 = vmatpush1.msra.mxu0 0.0
    %1571 = vmatprep.subr.mxu0 0.0
    %1572 = vmatpush1.msra.mxu0 0.0
    %1573 = vmatprep.subr.mxu0 0.0
    %1574 = vmatpush1.msra.mxu0 0.0
    %1575 = vmatprep.subr.mxu0 0.0
    %1576 = vmatpush1.msra.mxu0 0.0
    %1577 = vmatprep.subr.mxu0 0.0
    %1578 = vmatpush1.msra.mxu0 0.0
    %1579 = vmatprep.subr.mxu0 0.0
    %1580 = vmatpush1.msra.mxu0 0.0
    %1581 = vmatprep.subr.mxu0 0.0
    %1582 = vmatpush1.msra.mxu0 0.0
    %1583 = vmatprep.subr.mxu0 0.0
    %1584 = vmatpush1.msra.mxu0 0.0
    %1585 = vmatprep.subr.mxu0 0.0
    %1586 = vmatpush1.msra.mxu0 0.0
    %1587 = vmatprep.subr.mxu0 0.0
    %1588 = vmatpush1.msra.mxu0 0.0
    %1589 = vmatprep.subr.mxu0 0.0
    %1590 = vmatpush1.msra.mxu0 0.0
    %1591 = vmatprep.subr.mxu0 0.0
    %1592 = vmatpush1.msra.mxu0 0.0
    %1593 = vmatprep.subr.mxu0 0.0
    %1594 = vmatpush1.msra.mxu0 0.0
    %1595 = vmatprep.subr.mxu0 0.0
    %1596 = vmatpush1.msra.mxu0 0.0
    %1597 = vmatprep.subr.mxu0 0.0
    %1598 = vmatpush1.msra.mxu0 0.0
    %1599 = vmatprep.subr.mxu0 0.0
    %1600 = vmatpush1.msra.mxu0 0.0
    %1601 = vmatprep.subr.mxu0 0.0
    %1602 = vmatpush1.msra.mxu0 0.0
    %1603 = vmatprep.mubr.f32.mxu0 0.0
    %1604 = vmatmul.mubr.f32.gmra.mrb[0].mxu0 %v1537
    %v1605 = vpop.f32.mrb[0].mxu0
    %v1606 = vadd.f32 %v183, %v1605
    %v1607 = vpop.f32.mrb[0].mxu0
    %1608 = vdwg.mxu0
    %v1609 = vtanh.pop %v1606
    %v1610 = vmul.f32 %v1609, %v68
    %v1611 = vadd.f32 %v1610, %v69
    %v1612 = vmul.f32 %v1611, %v1412
    %1614 = vrot.lane.b32.xlu0 %v1611, 32
    %v1615 = vpop.permute.xlu0 %1614
    %v1617 = vmul.f32 %v1611, %v1615
    %1619 = vrot.lane.b32.xlu0 %v1617, 32
    %v1620 = vpop.permute.xlu0 %1619
    %v1622 = vadd.f32 %v1612, %v1620
    %v1623 = vtanh.pop %v1622
    %1625 = vrot.lane.b32.xlu0 %v1623, 32
    %v1626 = vpop.permute.xlu0 %1625
    %v1628 = vmul.f32 %v1611, %v1626
    %1630 = vrot.lane.b32.xlu0 %v1628, 64
    %v1631 = vpop.permute.xlu0 %1630
    %1633 = vst.msk [vmem:[#allocation2 + $0xc] sm:$0x3] %vm383, %v1631
    %v1634 = vrot.slane %v1525, 4
    %1635 = vrot.lane.b32.xlu0 %v1634, 64
    %v1636 = vpop.permute.xlu0 %1635
    %v1637 = vsel %vm185, %v1636, 0
    %1639 = vmatprep.subr.mxu0 0.0
    %1640 = vmatpush1.msra.mxu0 %v73
    %1641 = vmatprep.subr.mxu0 0.0
    %1642 = vmatpush1.msra.mxu0 %v74
    %1643 = vmatprep.subr.mxu0 0.0
    %1644 = vmatpush1.msra.mxu0 %v75
    %1645 = vmatprep.subr.mxu0 0.0
    %1646 = vmatpush1.msra.mxu0 %v76
    %1647 = vmatprep.subr.mxu0 0.0
    %1648 = vmatpush1.msra.mxu0 0.0
    %1649 = vmatprep.subr.mxu0 0.0
    %1650 = vmatpush1.msra.mxu0 0.0
    %1651 = vmatprep.subr.mxu0 0.0
    %1652 = vmatpush1.msra.mxu0 0.0
    %1653 = vmatprep.subr.mxu0 0.0
    %1654 = vmatpush1.msra.mxu0 0.0
    %1655 = vmatprep.subr.mxu0 0.0
    %1656 = vmatpush1.msra.mxu0 0.0
    %1657 = vmatprep.subr.mxu0 0.0
    %1658 = vmatpush1.msra.mxu0 0.0
    %1659 = vmatprep.subr.mxu0 0.0
    %1660 = vmatpush1.msra.mxu0 0.0
    %1661 = vmatprep.subr.mxu0 0.0
    %1662 = vmatpush1.msra.mxu0 0.0
    %1663 = vmatprep.subr.mxu0 0.0
    %1664 = vmatpush1.msra.mxu0 0.0
    %1665 = vmatprep.subr.mxu0 0.0
    %1666 = vmatpush1.msra.mxu0 0.0
    %1667 = vmatprep.subr.mxu0 0.0
    %1668 = vmatpush1.msra.mxu0 0.0
    %1669 = vmatprep.subr.mxu0 0.0
    %1670 = vmatpush1.msra.mxu0 0.0
    %1671 = vmatprep.subr.mxu0 0.0
    %1672 = vmatpush1.msra.mxu0 0.0
    %1673 = vmatprep.subr.mxu0 0.0
    %1674 = vmatpush1.msra.mxu0 0.0
    %1675 = vmatprep.subr.mxu0 0.0
    %1676 = vmatpush1.msra.mxu0 0.0
    %1677 = vmatprep.subr.mxu0 0.0
    %1678 = vmatpush1.msra.mxu0 0.0
    %1679 = vmatprep.subr.mxu0 0.0
    %1680 = vmatpush1.msra.mxu0 0.0
    %1681 = vmatprep.subr.mxu0 0.0
    %1682 = vmatpush1.msra.mxu0 0.0
    %1683 = vmatprep.subr.mxu0 0.0
    %1684 = vmatpush1.msra.mxu0 0.0
    %1685 = vmatprep.subr.mxu0 0.0
    %1686 = vmatpush1.msra.mxu0 0.0
    %1687 = vmatprep.subr.mxu0 0.0
    %1688 = vmatpush1.msra.mxu0 0.0
    %1689 = vmatprep.subr.mxu0 0.0
    %1690 = vmatpush1.msra.mxu0 0.0
    %1691 = vmatprep.subr.mxu0 0.0
    %1692 = vmatpush1.msra.mxu0 0.0
    %1693 = vmatprep.subr.mxu0 0.0
    %1694 = vmatpush1.msra.mxu0 0.0
    %1695 = vmatprep.subr.mxu0 0.0
    %1696 = vmatpush1.msra.mxu0 0.0
    %1697 = vmatprep.subr.mxu0 0.0
    %1698 = vmatpush1.msra.mxu0 0.0
    %1699 = vmatprep.subr.mxu0 0.0
    %1700 = vmatpush1.msra.mxu0 0.0
    %1701 = vmatprep.subr.mxu0 0.0
    %1702 = vmatpush1.msra.mxu0 0.0
    %1703 = vmatprep.mubr.f32.mxu0 0.0
    %1704 = vmatmul.mubr.f32.gmra.mrb[0].mxu0 %v1637
    %v1705 = vpop.f32.mrb[0].mxu0
    %v1706 = vadd.f32 0.0, %v1705
    %v1707 = vpop.f32.mrb[0].mxu0
    %1708 = vdwg.mxu0
    %v1710 = vrot.slane %v1706, 2
    %v1712 = vadd.f32 %v167, %v1710
    %v1713 = vtanh.pop %v1712
    %v1714 = vmul.f32 %v1713, %v68
    %v1715 = vadd.f32 %v1714, %v69
    %v1717 = vrot.slane %v1519, 6
    %v1719 = vmul.f32 %v1715, %v1717
    %1721 = vrot.lane.b32.xlu0 %v1715, 32
    %v1722 = vpop.permute.xlu0 %1721
    %v1724 = vmul.f32 %v1715, %v1722
    %1726 = vrot.lane.b32.xlu0 %v1724, 32
    %v1727 = vpop.permute.xlu0 %1726
    %v1729 = vadd.f32 %v1719, %v1727
    %v1730 = vtanh.pop %v1729
    %1732 = vrot.lane.b32.xlu0 %v1730, 32
    %v1733 = vpop.permute.xlu0 %1732
    %v1735 = vmul.f32 %v1715, %v1733
    %1737 = vrot.lane.b32.xlu0 %v1735, 64
    %v1738 = vpop.permute.xlu0 %1737
    %v1740 = vrot.slane %v1628, 2
    %1741 = vrot.lane.b32.xlu0 %v1740, 96
    %v1742 = vpop.permute.xlu0 %1741
    %v1744 = vsel %vm185, %v1738, %v1742
    %v1746 = vrot.slane %v1744, 6
    %v1747 = vsel %vm285, %v1746, 0
    %1749 = vmatprep.subr.mxu0 0.0
    %1750 = vmatpush1.msra.mxu0 %v170
    %1751 = vmatprep.subr.mxu0 0.0
    %1752 = vmatpush1.msra.mxu0 %v171
    %1753 = vmatprep.subr.mxu0 0.0
    %1754 = vmatpush1.msra.mxu0 %v172
    %1755 = vmatprep.subr.mxu0 0.0
    %1756 = vmatpush1.msra.mxu0 %v173
    %1757 = vmatprep.subr.mxu0 0.0
    %1758 = vmatpush1.msra.mxu0 %v174
    %1759 = vmatprep.subr.mxu0 0.0
    %1760 = vmatpush1.msra.mxu0 %v175
    %1761 = vmatprep.subr.mxu0 0.0
    %1762 = vmatpush1.msra.mxu0 %v176
    %1763 = vmatprep.subr.mxu0 0.0
    %1764 = vmatpush1.msra.mxu0 %v177
    %1765 = vmatprep.subr.mxu0 0.0
    %1766 = vmatpush1.msra.mxu0 0.0
    %1767 = vmatprep.subr.mxu0 0.0
    %1768 = vmatpush1.msra.mxu0 0.0
    %1769 = vmatprep.subr.mxu0 0.0
    %1770 = vmatpush1.msra.mxu0 0.0
    %1771 = vmatprep.subr.mxu0 0.0
    %1772 = vmatpush1.msra.mxu0 0.0
    %1773 = vmatprep.subr.mxu0 0.0
    %1774 = vmatpush1.msra.mxu0 0.0
    %1775 = vmatprep.subr.mxu0 0.0
    %1776 = vmatpush1.msra.mxu0 0.0
    %1777 = vmatprep.subr.mxu0 0.0
    %1778 = vmatpush1.msra.mxu0 0.0
    %1779 = vmatprep.subr.mxu0 0.0
    %1780 = vmatpush1.msra.mxu0 0.0
    %1781 = vmatprep.subr.mxu0 0.0
    %1782 = vmatpush1.msra.mxu0 0.0
    %1783 = vmatprep.subr.mxu0 0.0
    %1784 = vmatpush1.msra.mxu0 0.0
    %1785 = vmatprep.subr.mxu0 0.0
    %1786 = vmatpush1.msra.mxu0 0.0
    %1787 = vmatprep.subr.mxu0 0.0
    %1788 = vmatpush1.msra.mxu0 0.0
    %1789 = vmatprep.subr.mxu0 0.0
    %1790 = vmatpush1.msra.mxu0 0.0
    %1791 = vmatprep.subr.mxu0 0.0
    %1792 = vmatpush1.msra.mxu0 0.0
    %1793 = vmatprep.subr.mxu0 0.0
    %1794 = vmatpush1.msra.mxu0 0.0
    %1795 = vmatprep.subr.mxu0 0.0
    %1796 = vmatpush1.msra.mxu0 0.0
    %1797 = vmatprep.subr.mxu0 0.0
    %1798 = vmatpush1.msra.mxu0 0.0
    %1799 = vmatprep.subr.mxu0 0.0
    %1800 = vmatpush1.msra.mxu0 0.0
    %1801 = vmatprep.subr.mxu0 0.0
    %1802 = vmatpush1.msra.mxu0 0.0
    %1803 = vmatprep.subr.mxu0 0.0
    %1804 = vmatpush1.msra.mxu0 0.0
    %1805 = vmatprep.subr.mxu0 0.0
    %1806 = vmatpush1.msra.mxu0 0.0
    %1807 = vmatprep.subr.mxu0 0.0
    %1808 = vmatpush1.msra.mxu0 0.0
    %1809 = vmatprep.subr.mxu0 0.0
    %1810 = vmatpush1.msra.mxu0 0.0
    %1811 = vmatprep.subr.mxu0 0.0
    %1812 = vmatpush1.msra.mxu0 0.0
    %1813 = vmatprep.mubr.f32.mxu0 0.0
    %1814 = vmatmul.mubr.f32.gmra.mrb[0].mxu0 %v1747
    %v1815 = vpop.f32.mrb[0].mxu0
    %v1816 = vadd.f32 %v183, %v1815
    %v1817 = vpop.f32.mrb[0].mxu0
    %1818 = vdwg.mxu0
    %v1819 = vtanh.pop %v1816
    %v1820 = vmul.f32 %v1819, %v68
    %v1821 = vadd.f32 %v1820, %v69
    %v1822 = vmul.f32 %v1821, %v1622
    %1824 = vrot.lane.b32.xlu0 %v1821, 32
    %v1825 = vpop.permute.xlu0 %1824
    %v1827 = vmul.f32 %v1821, %v1825
    %1829 = vrot.lane.b32.xlu0 %v1827, 32
    %v1830 = vpop.permute.xlu0 %1829
    %v1832 = vadd.f32 %v1822, %v1830
    %v1833 = vtanh.pop %v1832
    %1835 = vrot.lane.b32.xlu0 %v1833, 32
    %v1836 = vpop.permute.xlu0 %1835
    %v1838 = vmul.f32 %v1821, %v1836
    %1840 = vrot.lane.b32.xlu0 %v1838, 64
    %v1841 = vpop.permute.xlu0 %1840
    %1843 = vst.msk [vmem:[#allocation2 + $0xe] sm:$0x3] %vm383, %v1841
    %v1844 = vld [vmem:[#allocation2] sm:$0xff]
    %v1845 = vld [vmem:[#allocation2 + $0x8] sm:$0xff]
    %v1846 = vld [vmem:[#allocation6] sm:$0xff]
    %v1847 = vld [vmem:[#allocation6 + $0x8] sm:$0xff]
    %v1848 = vld [vmem:[#allocation6 + $0x10] sm:$0xff]
    %v1849 = vld [vmem:[#allocation6 + $0x18] sm:$0xff]
    %v1850 = vld [vmem:[%s7] sm:$0x1]
    %v1852 = vlaneseq
    %v1853 = vshrl.u32 %v1852, 7
    %v1854 = vsub.s32 0, %v1853
    %v1855 = vrot.slane %v1850, %v1854
    %v1858 = vsel %vm185, %v1844, 0
    %v1861 = vsel %vm185, %v1845, 0
    %1863 = vmatprep.subr.mxu0 0.0
    %1864 = vmatpush1.msra.mxu0 %v1846
    %1865 = vmatprep.subr.mxu0 0.0
    %1866 = vmatpush1.msra.mxu0 %v1847
    %1867 = vmatprep.subr.mxu0 0.0
    %1868 = vmatpush1.msra.mxu0 %v1848
    %1869 = vmatprep.subr.mxu0 0.0
    %1870 = vmatpush1.msra.mxu0 %v1849
    %1871 = vmatprep.subr.mxu0 0.0
    %1872 = vmatpush1.msra.mxu0 0.0
    %1873 = vmatprep.subr.mxu0 0.0
    %1874 = vmatpush1.msra.mxu0 0.0
    %1875 = vmatprep.subr.mxu0 0.0
    %1876 = vmatpush1.msra.mxu0 0.0
    %1877 = vmatprep.subr.mxu0 0.0
    %1878 = vmatpush1.msra.mxu0 0.0
    %1879 = vmatprep.subr.mxu0 0.0
    %1880 = vmatpush1.msra.mxu0 0.0
    %1881 = vmatprep.subr.mxu0 0.0
    %1882 = vmatpush1.msra.mxu0 0.0
    %1883 = vmatprep.subr.mxu0 0.0
    %1884 = vmatpush1.msra.mxu0 0.0
    %1885 = vmatprep.subr.mxu0 0.0
    %1886 = vmatpush1.msra.mxu0 0.0
    %1887 = vmatprep.subr.mxu0 0.0
    %1888 = vmatpush1.msra.mxu0 0.0
    %1889 = vmatprep.subr.mxu0 0.0
    %1890 = vmatpush1.msra.mxu0 0.0
    %1891 = vmatprep.subr.mxu0 0.0
    %1892 = vmatpush1.msra.mxu0 0.0
    %1893 = vmatprep.subr.mxu0 0.0
    %1894 = vmatpush1.msra.mxu0 0.0
    %1895 = vmatprep.subr.mxu0 0.0
    %1896 = vmatpush1.msra.mxu0 0.0
    %1897 = vmatprep.subr.mxu0 0.0
    %1898 = vmatpush1.msra.mxu0 0.0
    %1899 = vmatprep.subr.mxu0 0.0
    %1900 = vmatpush1.msra.mxu0 0.0
    %1901 = vmatprep.subr.mxu0 0.0
    %1902 = vmatpush1.msra.mxu0 0.0
    %1903 = vmatprep.subr.mxu0 0.0
    %1904 = vmatpush1.msra.mxu0 0.0
    %1905 = vmatprep.subr.mxu0 0.0
    %1906 = vmatpush1.msra.mxu0 0.0
    %1907 = vmatprep.subr.mxu0 0.0
    %1908 = vmatpush1.msra.mxu0 0.0
    %1909 = vmatprep.subr.mxu0 0.0
    %1910 = vmatpush1.msra.mxu0 0.0
    %1911 = vmatprep.subr.mxu0 0.0
    %1912 = vmatpush1.msra.mxu0 0.0
    %1913 = vmatprep.subr.mxu0 0.0
    %1914 = vmatpush1.msra.mxu0 0.0
    %1915 = vmatprep.subr.mxu0 0.0
    %1916 = vmatpush1.msra.mxu0 0.0
    %1917 = vmatprep.subr.mxu0 0.0
    %1918 = vmatpush1.msra.mxu0 0.0
    %1919 = vmatprep.subr.mxu0 0.0
    %1920 = vmatpush1.msra.mxu0 0.0
    %1921 = vmatprep.subr.mxu0 0.0
    %1922 = vmatpush1.msra.mxu0 0.0
    %1923 = vmatprep.subr.mxu0 0.0
    %1924 = vmatpush1.msra.mxu0 0.0
    %1925 = vmatprep.subr.mxu0 0.0
    %1926 = vmatpush1.msra.mxu0 0.0
    %1927 = vmatprep.mubr.f32.mxu0 0.0
    %1928 = vmatmul.mubr.f32.gmra.mrb[0].mxu0 %v1858
    %v1929 = vpop.f32.mrb[0].mxu0
    %v1930 = vadd.f32 %v1855, %v1929
    %v1931 = vpop.f32.mrb[0].mxu0
    %1932 = vmatprep.mubr.f32.mxu0 0.0
    %1933 = vmatmul.mubr.f32.gmra.mrb[0].mxu0 %v1861
    %v1934 = vpop.f32.mrb[0].mxu0
    %v1935 = vadd.f32 %v1855, %v1934
    %v1936 = vpop.f32.mrb[0].mxu0
    %1937 = vdwg.mxu0
    %v1938 = vld [vmem:[%s8] sm:$0x1]
    %v1939 = vld [vmem:[#allocation3] sm:$0x1]
    %v1941 = vlaneseq
    %v1942 = vshrl.u32 %v1941, 7
    %v1943 = vsub.s32 0, %v1942
    %v1944 = vrot.slane %v1938, %v1943
    %v1946 = vmul.f32 %v1930, %v1944
    %v1947 = vmul.f32 %v1935, %v1944
    %v1948 = vsel %vm185, %v1946, 0.0
    %1949 = vadd.xlane.f32.xlu0 %v1948
    %v1950 = vpop.xlane.xlu0 %1949
    %v1951 = vsel %vm185, %v1947, 0.0
    %1952 = vadd.xlane.f32.xlu0 %v1951
    %v1953 = vpop.xlane.xlu0 %1952
    %v1955 = vlaneseq
    %v1956 = vshrl.u32 %v1955, 7
    %v1957 = vsub.s32 0, %v1956
    %v1958 = vrot.slane %v1939, %v1957
    %v1960 = vadd.f32 %v1950, %v1958
    %v1961 = vadd.f32 %v1953, %v1958
    %vm1962 = vcmask 7168
    %1963 = vst.msk [vmem:[%s10] sm:$0xff] %vm1962, %v1960
    %1964 = vst.msk [vmem:[%s10 + $0x8] sm:$0xff] %vm1962, %v1961
    // Predicated region
    $region50: #{regression_lstm_forward.1} parent=1 // pred_check
      _
    $region51: #{regression_lstm_forward.1} parent=1 // pred_check_branch
      %1966 = sbr.rel (0) target = $region53
    $region52: #{regression_lstm_forward.1} parent=1 // pred_region
      _
    $region53: #{regression_lstm_forward.1} parent=1 // pred_fallthru
      _
    // Predicated region
    $region54: #{regression_lstm_forward.1} parent=1 // pred_check
      _
    $region55: #{regression_lstm_forward.1} parent=1 // pred_check_branch
      %1968 = sbr.rel (0) target = $region57
    $region56: #{regression_lstm_forward.1} parent=1 // pred_region
      _
    $region57: #{regression_lstm_forward.1} parent=1 // pred_fallthru
      _
    %1969 = vsyncpa [#allocation5], 1
    %1970 = vsyncpa [#allocation7], 1

</llo_original>
